<compile_context>
chip_gen: v7x
topology: tpu7x:2x2x1
jax: 0.10.0
libtpu: 0.0.40
codegen_flags: <defaults>
</compile_context>

<pallas_src>
import numpy as np
import jax
import jax.numpy as jnp
from jax.experimental import pallas as pl
from jax.experimental.pallas import tpu as pltpu


# ----------------------------------------------------------------------------
# Positional encoding (exact port of positional_encodings.PositionalEncoding2D
# wrapped by PositionalEncodingPermute2D + Summer). Data-independent glue.
# ----------------------------------------------------------------------------
def positional_encoding_2d(channels: int, H: int, W: int) -> jnp.ndarray:
    org_channels = channels
    ch = int(np.ceil(channels / 4) * 2)
    inv_freq = 1.0 / (10000.0 ** (np.arange(0, ch, 2, dtype=np.float32) / ch))
    pos_x = np.arange(H, dtype=np.float32)          # first spatial dim (H)
    pos_y = np.arange(W, dtype=np.float32)          # second spatial dim (W)
    sin_inp_x = np.einsum("i,j->ij", pos_x, inv_freq)   # (H, ch/2)
    sin_inp_y = np.einsum("i,j->ij", pos_y, inv_freq)   # (W, ch/2)

    def get_emb(sin_inp):
        emb = np.stack([np.sin(sin_inp), np.cos(sin_inp)], axis=-1)
        return emb.reshape(sin_inp.shape[0], -1)

    emb_x = get_emb(sin_inp_x)[:, None, :]          # (H, 1, ch)
    emb_y = get_emb(sin_inp_y)[None, :, :]          # (1, W, ch)
    emb = np.zeros((H, W, 2 * ch), dtype=np.float32)
    emb[:, :, :ch] = emb_x
    emb[:, :, ch:2 * ch] = emb_y
    return jnp.asarray(emb[:, :, :org_channels])    # (H, W, C)


# ----------------------------------------------------------------------------
# Pallas kernel factory: full residual block for B_blk batch items per grid
# step; data kept as (channels-on-sublanes, flattened-spatial-on-lanes).
# ----------------------------------------------------------------------------
def _make_kernel(H, W, C, Cp, P, Bb):
    HW = H * W
    # taps in (ky, kx) = (dy+1, dx+1) order, matching the packed weight cols
    taps = [(dy, dx) for dy in (-1, 0, 1) for dx in (-1, 0, 1)]

    def kernel(x_ref, pe_ref, w_ref, t_ref, m_ref, o_ref,
               xext_ref, hext_ref, patch_ref):
        # x_ref    : (Bb, C, HW)       raw input block (f32)
        # pe_ref   : (C, HW)           positional-encoding table (f32)
        # w_ref    : (2, Cp, 9*Cp)     BN-folded conv1/conv2 weights (bf16)
        # t_ref    : (Cp, 2)           folded per-channel shifts (f32)
        # m_ref    : (2, HW)           column-wrap masks for dx = -1 / +1 taps
        # o_ref    : (Bb, C, HW)       output block (f32, lane-dense)
        # xext_ref : (Bb, Cp, HW+2P)   x+PE, zero halo + channel pad (f32)
        # hext_ref : (Bb, Cp, HW+2P)   h1, zero halo (bf16)
        # patch_ref: (9*Cp, Bb*HW)     im2col matrix (bf16)

        zx = jnp.zeros((Cp, HW + 2 * P), jnp.float32)
        zh = jnp.zeros((Cp, P), jnp.bfloat16)

        # ---- fused PE add + halo pad (128-lane aligned stores) --------------
        for b in range(Bb):
            xext_ref[b] = zx                                   # halo + pad rows
            xext_ref[b, :C, P:P + HW] = x_ref[b] + pe_ref[...]
            hext_ref[b, :, :P] = zh                            # halo strips only
            hext_ref[b, :, P + HW:] = zh                       # (interior fully
                                                               #  rewritten below)

        def build_patches(src_ref):
            # tap shift s = dy*W + dx is a pure lane shift inside the halo'd
            # slab; row overflow lands in the zero halo, column wrap is masked.
            for t, (dy, dx) in enumerate(taps):
                s = dy * W + dx
                for b in range(Bb):
                    piece = src_ref[b, :, P + s:P + s + HW]        # (Cp, HW)
                    if dx == -1:
                        piece = piece * m_ref[0:1, :]              # x == 0 invalid
                    elif dx == 1:
                        piece = piece * m_ref[1:2, :]              # x == W-1 invalid
                    patch_ref[t * Cp:(t + 1) * Cp,
                              b * HW:(b + 1) * HW] = piece.astype(jnp.bfloat16)

        # ---- conv1 (+ folded bias/BN1) + ReLU: one wide-N MXU matmul --------
        build_patches(xext_ref)
        h1 = jnp.dot(w_ref[0], patch_ref[...],
                     preferred_element_type=jnp.float32)           # (Cp, Bb*HW)
        h1 = jnp.maximum(h1 + t_ref[:, 0:1], 0.0)                  # pad rows -> 0
        for b in range(Bb):
            hext_ref[b, :, P:P + HW] = h1[:, b * HW:(b + 1) * HW].astype(jnp.bfloat16)

        # ---- conv2 (+ folded bias/BN2) --------------------------------------
        build_patches(hext_ref)
        h2 = jnp.dot(w_ref[1], patch_ref[...],
                     preferred_element_type=jnp.float32) + t_ref[:, 1:2]

        # ---- residual add with x_pe (halo-free interior) + final ReLU -------
        for b in range(Bb):
            res = jnp.maximum(h2[:, b * HW:(b + 1) * HW]
                              + xext_ref[b, :, P:P + HW], 0.0)     # (Cp, HW)
            o_ref[b] = res[:C].astype(o_ref.dtype)

    return kernel


# ----------------------------------------------------------------------------
# Batch-block sizing: fit VMEM (conservative for v7x's 64 MiB) and keep >= 2
# grid steps when possible so both v7x TensorCores get work.
# ----------------------------------------------------------------------------
def _pick_block_b(B, C, HW, P, Cp, vmem_budget=24 << 20):
    per_img = 2 * (C * HW * 4) * 2            # x + out blocks, double-buffered
    per_img += Cp * (HW + 2 * P) * (4 + 2)    # xext (f32) + hext (bf16) slabs
    per_img += 9 * Cp * HW * 2                # im2col slice (bf16)
    cap = max(1, int(vmem_budget // per_img))
    cap = min(cap, 8)                         # keep the unrolled body small
    target = min(cap, max(1, -(-B // 2)))     # aim for >= 2 grid steps
    bb = 1
    for d in range(1, B + 1):
        if B % d == 0 and d <= target:
            bb = d
    return bb


# ----------------------------------------------------------------------------
# Wrapper (NCHW in / NCHW out, like the PyTorch module).
# ----------------------------------------------------------------------------
def res_block_summary_positional(x_nchw, params, *, eps=1e-5, block_b=None):
    B, C, H, W = x_nchw.shape
    HW = H * W
    P = ((W + 1 + 127) // 128) * 128    # lane-tile-aligned halo, >= max shift W+1
    Cp = ((C + 15) // 16) * 16          # bf16 sublane-tile channel padding

    if block_b is None:
        block_b = _pick_block_b(B, C, HW, P, Cp)
    assert B % block_b == 0, "block_b must divide the batch"

    # Summer(PositionalEncodingPermute2D): the PE table, added in-kernel.
    pe = jnp.transpose(positional_encoding_2d(C, H, W), (2, 0, 1)).reshape(C, HW)
    x_flat = x_nchw.astype(jnp.float32).reshape(B, C, HW)          # free reshape

    # Fold eval-mode BatchNorm and the conv bias into weights / one shift:
    #   BN(conv_w(x) + b) = conv_{w*s}(x) + (beta + (b - mean) * s)
    s1 = params["gamma1"] / jnp.sqrt(params["var1"] + eps)
    s2 = params["gamma2"] / jnp.sqrt(params["var2"] + eps)
    t1 = params["beta1"] + (params["b1"] - params["mean1"]) * s1
    t2 = params["beta2"] + (params["b2"] - params["mean2"]) * s2
    w1 = params["w1"] * s1[:, None, None, None]                    # OIHW, scaled
    w2 = params["w2"] * s2[:, None, None, None]
    Cout = w1.shape[0]
    assert Cout == C, "basic ResBlock requires out_channels == in_channels"

    def to_mat(w):   # OIHW -> (Cp, 9*Cp); per-tap column blocks, zero padding
        wt = jnp.transpose(w, (0, 2, 3, 1)).reshape(C, 9, C)       # (O, tap, I)
        m = jnp.zeros((Cp, 9, Cp), jnp.float32)
        m = m.at[:C, :, :C].set(wt)
        return m.reshape(Cp, 9 * Cp)

    w_packed = jnp.stack([to_mat(w1), to_mat(w2)]).astype(jnp.bfloat16)  # (2,Cp,9Cp)
    t_packed = (jnp.zeros((Cp, 2), jnp.float32)
                .at[:C, 0].set(t1).at[:C, 1].set(t2))                    # (Cp,2)

    # column-wrap masks for the dx = -1 / dx = +1 taps of the flattened conv
    col = np.arange(HW) % W
    col_mask = jnp.asarray(np.stack([(col != 0), (col != W - 1)]),
                           jnp.float32)                                  # (2,HW)

    out_flat = pl.pallas_call(
        _make_kernel(H, W, C, Cp, P, block_b),
        out_shape=jax.ShapeDtypeStruct((B, C, HW), jnp.float32),
        grid=(B // block_b,),
        in_specs=[
            pl.BlockSpec((block_b, C, HW), lambda g: (g, 0, 0)),   # raw x block
            pl.BlockSpec((C, HW), lambda g: (0, 0)),               # PE table
            pl.BlockSpec((2, Cp, 9 * Cp), lambda g: (0, 0, 0)),    # weights
            pl.BlockSpec((Cp, 2), lambda g: (0, 0)),               # shifts
            pl.BlockSpec((2, HW), lambda g: (0, 0)),               # col masks
        ],
        out_specs=pl.BlockSpec((block_b, C, HW), lambda g: (g, 0, 0)),
        scratch_shapes=[
            pltpu.VMEM((block_b, Cp, HW + 2 * P), jnp.float32),    # x+PE + halo
            pltpu.VMEM((block_b, Cp, HW + 2 * P), jnp.bfloat16),   # h1 + halo
            pltpu.VMEM((9 * Cp, block_b * HW), jnp.bfloat16),      # im2col
        ],
        compiler_params=pltpu.CompilerParams(
            dimension_semantics=("parallel",)),
    )(x_flat, pe, w_packed, t_packed, col_mask)

    return out_flat.reshape(B, C, H, W)                            # NCHW


# ----------------------------------------------------------------------------
# Pure-JAX reference (XLA conv, HIGHEST precision) for validation.
# NOTE: the kernel runs the convs in bf16 on the MXU (f32 accumulation);
# tolerances below reflect that intentional precision tradeoff.
# ----------------------------------------------------------------------------
def _reference(x_nchw, params, pe_hwc):
    eps = 1e-5
    xpe = x_nchw + jnp.transpose(pe_hwc, (2, 0, 1))[None]

    def conv(x, w, b):
        y = jax.lax.conv_general_dilated(
            x, w, (1, 1), ((1, 1), (1, 1)),
            dimension_numbers=("NCHW", "OIHW", "NCHW"),
            precision=jax.lax.Precision.HIGHEST)
        return y + b[None, :, None, None]

    def bn(x, g, bt, m, v):
        s = g / jnp.sqrt(v + eps)
        return x * s[None, :, None, None] + (bt - m * s)[None, :, None, None]

    h1 = jax.nn.relu(bn(conv(xpe, params["w1"], params["b1"]),
                        params["gamma1"], params["beta1"],
                        params["mean1"], params["var1"]))
    h2 = bn(conv(h1, params["w2"], params["b2"]),
            params["gamma2"], params["beta2"],
            params["mean2"], params["var2"])
    return jax.nn.relu(h2 + xpe)


if __name__ == "__main__":
    B, C, H, W = 2, 4, 16, 16
    key = jax.random.PRNGKey(0)
    ks = jax.random.split(key, 9)

    params = {
        # conv1 / BN1
        "w1": 0.1 * jax.random.normal(ks[0], (C, C, 3, 3), jnp.float32),  # OIHW
        "b1": 0.05 * jax.random.normal(ks[1], (C,), jnp.float32),
        "gamma1": 1.0 + 0.1 * jax.random.normal(ks[2], (C,), jnp.float32),
        "beta1": 0.05 * jax.random.normal(ks[3], (C,), jnp.float32),
        "mean1": jnp.zeros((C,), jnp.float32),   # BN running stats at init
        "var1": jnp.ones((C,), jnp.float32),
        # conv2 / BN2
        "w2": 0.1 * jax.random.normal(ks[4], (C, C, 3, 3), jnp.float32),
        "b2": 0.05 * jax.random.normal(ks[5], (C,), jnp.float32),
        "gamma2": 1.0 + 0.1 * jax.random.normal(ks[6], (C,), jnp.float32),
        "beta2": 0.05 * jax.random.normal(ks[7], (C,), jnp.float32),
        "mean2": jnp.zeros((C,), jnp.float32),
        "var2": jnp.ones((C,), jnp.float32),
    }

    x = jax.random.normal(ks[8], (B, C, H, W), jnp.float32)
    ref = _reference(x, params, positional_encoding_2d(C, H, W))

    # default batch-block choice (B_blk=1 -> 2 parallel grid steps) ...
    out_a = jax.block_until_ready(res_block_summary_positional(x, params))
    # ... and the wide-N batched path (B_blk=2 -> one (Cp,144)@(144,512) matmul)
    out_b = jax.block_until_ready(
        res_block_summary_positional(x, params, block_b=2))

    for out in (out_a, out_b):
        assert out.shape == (B, C, H, W)
        np.testing.assert_allclose(np.asarray(out), np.asarray(ref),
                                   atol=3e-2, rtol=3e-2)

    print("KERNEL_OK")
</pallas_src>

<mosaic_0001>
module attributes {stable_mosaic.version = 11 : i64} {
  func.func @kernel(%arg0: i32, %arg1: memref<1x4x256xf32, #tpu.memory_space<vmem>>, %arg2: memref<4x256xf32, #tpu.memory_space<vmem>>, %arg3: memref<2x16x144xbf16, #tpu.memory_space<vmem>>, %arg4: memref<16x2xf32, #tpu.memory_space<vmem>>, %arg5: memref<2x256xf32, #tpu.memory_space<vmem>>, %arg6: memref<1x4x256xf32, #tpu.memory_space<vmem>>, %arg7: memref<1x16x512xf32, #tpu.memory_space<vmem>>, %arg8: memref<1x16x512xbf16, #tpu.memory_space<vmem>>, %arg9: memref<144x256xbf16, #tpu.memory_space<vmem>>) attributes {dimension_semantics = [#tpu.dimension_semantics<parallel>], iteration_bounds = array<i64: 2>, scalar_prefetch = 0 : i64, scratch_operands = 3 : i64, tpu.core_type = #tpu.core_type<tc>, window_params = [{transform_indices = @transform_0, window_bounds = array<i64: 1, 4, 256>}, {pipeline_mode = #tpu.pipeline_mode<synchronous>, transform_indices = @transform_1, window_bounds = array<i64: 4, 256>}, {pipeline_mode = #tpu.pipeline_mode<synchronous>, transform_indices = @transform_2, window_bounds = array<i64: 2, 16, 144>}, {pipeline_mode = #tpu.pipeline_mode<synchronous>, transform_indices = @transform_3, window_bounds = array<i64: 16, 2>}, {pipeline_mode = #tpu.pipeline_mode<synchronous>, transform_indices = @transform_4, window_bounds = array<i64: 2, 256>}, {transform_indices = @transform_5, window_bounds = array<i64: 1, 4, 256>}]} {
    %cst = arith.constant 0.000000e+00 : f32
    %0 = vector.broadcast %cst : f32 to vector<16x512xf32>
    %cst_0 = arith.constant 0.000000e+00 : bf16
    %1 = vector.broadcast %cst_0 : bf16 to vector<16x128xbf16>
    %c0 = arith.constant 0 : index
    %c0_1 = arith.constant 0 : index
    %c0_2 = arith.constant 0 : index
    %2 = vector.load %arg7[%c0, %c0_1, %c0_2] : memref<1x16x512xf32, #tpu.memory_space<vmem>>, vector<1x16x512xf32>
    %3 = vector.shape_cast %2 : vector<1x16x512xf32> to vector<16x512xf32>
    %4 = vector.shape_cast %0 : vector<16x512xf32> to vector<1x16x512xf32>
    tpu.vector_store %arg7[%c0, %c0_1, %c0_2], %4 {strides = array<i32>} : memref<1x16x512xf32, #tpu.memory_space<vmem>>, vector<1x16x512xf32>,
    %c0_3 = arith.constant 0 : index
    %c0_4 = arith.constant 0 : index
    %c0_5 = arith.constant 0 : index
    %5 = vector.load %arg1[%c0_3, %c0_4, %c0_5] : memref<1x4x256xf32, #tpu.memory_space<vmem>>, vector<1x4x256xf32>
    %6 = vector.shape_cast %5 : vector<1x4x256xf32> to vector<4x256xf32>
    %c0_6 = arith.constant 0 : index
    %c0_7 = arith.constant 0 : index
    %7 = vector.load %arg2[%c0_6, %c0_7] : memref<4x256xf32, #tpu.memory_space<vmem>>, vector<4x256xf32>
    %8 = arith.addf %6, %7 : vector<4x256xf32>
    %c0_8 = arith.constant 0 : index
    %c0_9 = arith.constant 0 : index
    %c128 = arith.constant 128 : index
    %9 = vector.load %arg7[%c0_8, %c0_9, %c128] : memref<1x16x512xf32, #tpu.memory_space<vmem>>, vector<1x4x256xf32>
    %10 = vector.shape_cast %9 : vector<1x4x256xf32> to vector<4x256xf32>
    %11 = vector.shape_cast %8 : vector<4x256xf32> to vector<1x4x256xf32>
    tpu.vector_store %arg7[%c0_8, %c0_9, %c128], %11 {strides = array<i32>} : memref<1x16x512xf32, #tpu.memory_space<vmem>>, vector<1x4x256xf32>,
    %c0_10 = arith.constant 0 : index
    %c0_11 = arith.constant 0 : index
    %c0_12 = arith.constant 0 : index
    %12 = vector.load %arg8[%c0_10, %c0_11, %c0_12] : memref<1x16x512xbf16, #tpu.memory_space<vmem>>, vector<1x16x128xbf16>
    %13 = vector.shape_cast %12 : vector<1x16x128xbf16> to vector<16x128xbf16>
    %14 = vector.shape_cast %1 : vector<16x128xbf16> to vector<1x16x128xbf16>
    tpu.vector_store %arg8[%c0_10, %c0_11, %c0_12], %14 {strides = array<i32>} : memref<1x16x512xbf16, #tpu.memory_space<vmem>>, vector<1x16x128xbf16>,
    %c0_13 = arith.constant 0 : index
    %c0_14 = arith.constant 0 : index
    %c384 = arith.constant 384 : index
    %15 = vector.load %arg8[%c0_13, %c0_14, %c384] : memref<1x16x512xbf16, #tpu.memory_space<vmem>>, vector<1x16x128xbf16>
    %16 = vector.shape_cast %15 : vector<1x16x128xbf16> to vector<16x128xbf16>
    %17 = vector.shape_cast %1 : vector<16x128xbf16> to vector<1x16x128xbf16>
    tpu.vector_store %arg8[%c0_13, %c0_14, %c384], %17 {strides = array<i32>} : memref<1x16x512xbf16, #tpu.memory_space<vmem>>, vector<1x16x128xbf16>,
    %c0_15 = arith.constant 0 : index
    %c0_16 = arith.constant 0 : index
    %c111 = arith.constant 111 : index
    %18 = vector.load %arg7[%c0_15, %c0_16, %c111] : memref<1x16x512xf32, #tpu.memory_space<vmem>>, vector<1x16x256xf32>
    %19 = vector.shape_cast %18 : vector<1x16x256xf32> to vector<16x256xf32>
    %c0_17 = arith.constant 0 : index
    %c0_18 = arith.constant 0 : index
    %20 = vector.load %arg5[%c0_17, %c0_18] : memref<2x256xf32, #tpu.memory_space<vmem>>, vector<1x256xf32>
    %21 = vector.broadcast %20 : vector<1x256xf32> to vector<16x256xf32>
    %22 = arith.mulf %19, %21 : vector<16x256xf32>
    %23 = arith.truncf %22 : vector<16x256xf32> to vector<16x256xbf16>
    %c0_19 = arith.constant 0 : index
    %c0_20 = arith.constant 0 : index
    %24 = vector.load %arg9[%c0_19, %c0_20] : memref<144x256xbf16, #tpu.memory_space<vmem>>, vector<16x256xbf16>
    tpu.vector_store %arg9[%c0_19, %c0_20], %23 {strides = array<i32>} : memref<144x256xbf16, #tpu.memory_space<vmem>>, vector<16x256xbf16>,
    %c0_21 = arith.constant 0 : index
    %c0_22 = arith.constant 0 : index
    %c112 = arith.constant 112 : index
    %25 = vector.load %arg7[%c0_21, %c0_22, %c112] : memref<1x16x512xf32, #tpu.memory_space<vmem>>, vector<1x16x256xf32>
    %26 = vector.shape_cast %25 : vector<1x16x256xf32> to vector<16x256xf32>
    %27 = arith.truncf %26 : vector<16x256xf32> to vector<16x256xbf16>
    %c16 = arith.constant 16 : index
    %c0_23 = arith.constant 0 : index
    %28 = vector.load %arg9[%c16, %c0_23] : memref<144x256xbf16, #tpu.memory_space<vmem>>, vector<16x256xbf16>
    tpu.vector_store %arg9[%c16, %c0_23], %27 {strides = array<i32>} : memref<144x256xbf16, #tpu.memory_space<vmem>>, vector<16x256xbf16>,
    %c0_24 = arith.constant 0 : index
    %c0_25 = arith.constant 0 : index
    %c113 = arith.constant 113 : index
    %29 = vector.load %arg7[%c0_24, %c0_25, %c113] : memref<1x16x512xf32, #tpu.memory_space<vmem>>, vector<1x16x256xf32>
    %30 = vector.shape_cast %29 : vector<1x16x256xf32> to vector<16x256xf32>
    %c1 = arith.constant 1 : index
    %c0_26 = arith.constant 0 : index
    %31 = vector.load %arg5[%c1, %c0_26] : memref<2x256xf32, #tpu.memory_space<vmem>>, vector<1x256xf32>
    %32 = vector.broadcast %31 : vector<1x256xf32> to vector<16x256xf32>
    %33 = arith.mulf %30, %32 : vector<16x256xf32>
    %34 = arith.truncf %33 : vector<16x256xf32> to vector<16x256xbf16>
    %c32 = arith.constant 32 : index
    %c0_27 = arith.constant 0 : index
    %35 = vector.load %arg9[%c32, %c0_27] : memref<144x256xbf16, #tpu.memory_space<vmem>>, vector<16x256xbf16>
    tpu.vector_store %arg9[%c32, %c0_27], %34 {strides = array<i32>} : memref<144x256xbf16, #tpu.memory_space<vmem>>, vector<16x256xbf16>,
    %c0_28 = arith.constant 0 : index
    %c0_29 = arith.constant 0 : index
    %c127 = arith.constant 127 : index
    %36 = vector.load %arg7[%c0_28, %c0_29, %c127] : memref<1x16x512xf32, #tpu.memory_space<vmem>>, vector<1x16x256xf32>
    %37 = vector.shape_cast %36 : vector<1x16x256xf32> to vector<16x256xf32>
    %c0_30 = arith.constant 0 : index
    %c0_31 = arith.constant 0 : index
    %38 = vector.load %arg5[%c0_30, %c0_31] : memref<2x256xf32, #tpu.memory_space<vmem>>, vector<1x256xf32>
    %39 = vector.broadcast %38 : vector<1x256xf32> to vector<16x256xf32>
    %40 = arith.mulf %37, %39 : vector<16x256xf32>
    %41 = arith.truncf %40 : vector<16x256xf32> to vector<16x256xbf16>
    %c48 = arith.constant 48 : index
    %c0_32 = arith.constant 0 : index
    %42 = vector.load %arg9[%c48, %c0_32] : memref<144x256xbf16, #tpu.memory_space<vmem>>, vector<16x256xbf16>
    tpu.vector_store %arg9[%c48, %c0_32], %41 {strides = array<i32>} : memref<144x256xbf16, #tpu.memory_space<vmem>>, vector<16x256xbf16>,
    %c0_33 = arith.constant 0 : index
    %c0_34 = arith.constant 0 : index
    %c128_35 = arith.constant 128 : index
    %43 = vector.load %arg7[%c0_33, %c0_34, %c128_35] : memref<1x16x512xf32, #tpu.memory_space<vmem>>, vector<1x16x256xf32>
    %44 = vector.shape_cast %43 : vector<1x16x256xf32> to vector<16x256xf32>
    %45 = arith.truncf %44 : vector<16x256xf32> to vector<16x256xbf16>
    %c64 = arith.constant 64 : index
    %c0_36 = arith.constant 0 : index
    %46 = vector.load %arg9[%c64, %c0_36] : memref<144x256xbf16, #tpu.memory_space<vmem>>, vector<16x256xbf16>
    tpu.vector_store %arg9[%c64, %c0_36], %45 {strides = array<i32>} : memref<144x256xbf16, #tpu.memory_space<vmem>>, vector<16x256xbf16>,
    %c0_37 = arith.constant 0 : index
    %c0_38 = arith.constant 0 : index
    %c129 = arith.constant 129 : index
    %47 = vector.load %arg7[%c0_37, %c0_38, %c129] : memref<1x16x512xf32, #tpu.memory_space<vmem>>, vector<1x16x256xf32>
    %48 = vector.shape_cast %47 : vector<1x16x256xf32> to vector<16x256xf32>
    %c1_39 = arith.constant 1 : index
    %c0_40 = arith.constant 0 : index
    %49 = vector.load %arg5[%c1_39, %c0_40] : memref<2x256xf32, #tpu.memory_space<vmem>>, vector<1x256xf32>
    %50 = vector.broadcast %49 : vector<1x256xf32> to vector<16x256xf32>
    %51 = arith.mulf %48, %50 : vector<16x256xf32>
    %52 = arith.truncf %51 : vector<16x256xf32> to vector<16x256xbf16>
    %c80 = arith.constant 80 : index
    %c0_41 = arith.constant 0 : index
    %53 = vector.load %arg9[%c80, %c0_41] : memref<144x256xbf16, #tpu.memory_space<vmem>>, vector<16x256xbf16>
    tpu.vector_store %arg9[%c80, %c0_41], %52 {strides = array<i32>} : memref<144x256xbf16, #tpu.memory_space<vmem>>, vector<16x256xbf16>,
    %c0_42 = arith.constant 0 : index
    %c0_43 = arith.constant 0 : index
    %c143 = arith.constant 143 : index
    %54 = vector.load %arg7[%c0_42, %c0_43, %c143] : memref<1x16x512xf32, #tpu.memory_space<vmem>>, vector<1x16x256xf32>
    %55 = vector.shape_cast %54 : vector<1x16x256xf32> to vector<16x256xf32>
    %c0_44 = arith.constant 0 : index
    %c0_45 = arith.constant 0 : index
    %56 = vector.load %arg5[%c0_44, %c0_45] : memref<2x256xf32, #tpu.memory_space<vmem>>, vector<1x256xf32>
    %57 = vector.broadcast %56 : vector<1x256xf32> to vector<16x256xf32>
    %58 = arith.mulf %55, %57 : vector<16x256xf32>
    %59 = arith.truncf %58 : vector<16x256xf32> to vector<16x256xbf16>
    %c96 = arith.constant 96 : index
    %c0_46 = arith.constant 0 : index
    %60 = vector.load %arg9[%c96, %c0_46] : memref<144x256xbf16, #tpu.memory_space<vmem>>, vector<16x256xbf16>
    tpu.vector_store %arg9[%c96, %c0_46], %59 {strides = array<i32>} : memref<144x256xbf16, #tpu.memory_space<vmem>>, vector<16x256xbf16>,
    %c0_47 = arith.constant 0 : index
    %c0_48 = arith.constant 0 : index
    %c144 = arith.constant 144 : index
    %61 = vector.load %arg7[%c0_47, %c0_48, %c144] : memref<1x16x512xf32, #tpu.memory_space<vmem>>, vector<1x16x256xf32>
    %62 = vector.shape_cast %61 : vector<1x16x256xf32> to vector<16x256xf32>
    %63 = arith.truncf %62 : vector<16x256xf32> to vector<16x256xbf16>
    %c112_49 = arith.constant 112 : index
    %c0_50 = arith.constant 0 : index
    %64 = vector.load %arg9[%c112_49, %c0_50] : memref<144x256xbf16, #tpu.memory_space<vmem>>, vector<16x256xbf16>
    tpu.vector_store %arg9[%c112_49, %c0_50], %63 {strides = array<i32>} : memref<144x256xbf16, #tpu.memory_space<vmem>>, vector<16x256xbf16>,
    %c0_51 = arith.constant 0 : index
    %c0_52 = arith.constant 0 : index
    %c145 = arith.constant 145 : index
    %65 = vector.load %arg7[%c0_51, %c0_52, %c145] : memref<1x16x512xf32, #tpu.memory_space<vmem>>, vector<1x16x256xf32>
    %66 = vector.shape_cast %65 : vector<1x16x256xf32> to vector<16x256xf32>
    %c1_53 = arith.constant 1 : index
    %c0_54 = arith.constant 0 : index
    %67 = vector.load %arg5[%c1_53, %c0_54] : memref<2x256xf32, #tpu.memory_space<vmem>>, vector<1x256xf32>
    %68 = vector.broadcast %67 : vector<1x256xf32> to vector<16x256xf32>
    %69 = arith.mulf %66, %68 : vector<16x256xf32>
    %70 = arith.truncf %69 : vector<16x256xf32> to vector<16x256xbf16>
    %c128_55 = arith.constant 128 : index
    %c0_56 = arith.constant 0 : index
    %71 = vector.load %arg9[%c128_55, %c0_56] : memref<144x256xbf16, #tpu.memory_space<vmem>>, vector<16x256xbf16>
    tpu.vector_store %arg9[%c128_55, %c0_56], %70 {strides = array<i32>} : memref<144x256xbf16, #tpu.memory_space<vmem>>, vector<16x256xbf16>,
    %c0_57 = arith.constant 0 : index
    %c0_58 = arith.constant 0 : index
    %c0_59 = arith.constant 0 : index
    %72 = vector.load %arg3[%c0_57, %c0_58, %c0_59] : memref<2x16x144xbf16, #tpu.memory_space<vmem>>, vector<1x16x144xbf16>
    %73 = vector.shape_cast %72 : vector<1x16x144xbf16> to vector<16x144xbf16>
    %c0_60 = arith.constant 0 : index
    %c0_61 = arith.constant 0 : index
    %74 = vector.load %arg9[%c0_60, %c0_61] : memref<144x256xbf16, #tpu.memory_space<vmem>>, vector<144x256xbf16>
    %cst_62 = arith.constant dense<0.000000e+00> : vector<16x256xf32>
    %75 = tpu.matmul %73, %74, %cst_62 {dimension_numbers = #tpu.dot_dimension_numbers<[1], [0], [0], [1], [0, 0, 1, 1], [], []>} : vector<16x144xbf16>, vector<144x256xbf16>, vector<16x256xf32> -> vector<16x256xf32>
    %c0_63 = arith.constant 0 : index
    %c0_64 = arith.constant 0 : index
    %76 = vector.load %arg4[%c0_63, %c0_64] : memref<16x2xf32, #tpu.memory_space<vmem>>, vector<16x1xf32>
    %77 = vector.broadcast %76 : vector<16x1xf32> to vector<16x256xf32>
    %78 = arith.addf %75, %77 : vector<16x256xf32>
    %cst_65 = arith.constant 0.000000e+00 : f32
    %79 = vector.broadcast %cst_65 : f32 to vector<16x256xf32>
    %80 = arith.maximumf %78, %79 : vector<16x256xf32>
    %81 = arith.truncf %80 : vector<16x256xf32> to vector<16x256xbf16>
    %c0_66 = arith.constant 0 : index
    %c0_67 = arith.constant 0 : index
    %c128_68 = arith.constant 128 : index
    %82 = vector.load %arg8[%c0_66, %c0_67, %c128_68] : memref<1x16x512xbf16, #tpu.memory_space<vmem>>, vector<1x16x256xbf16>
    %83 = vector.shape_cast %82 : vector<1x16x256xbf16> to vector<16x256xbf16>
    %84 = vector.shape_cast %81 : vector<16x256xbf16> to vector<1x16x256xbf16>
    tpu.vector_store %arg8[%c0_66, %c0_67, %c128_68], %84 {strides = array<i32>} : memref<1x16x512xbf16, #tpu.memory_space<vmem>>, vector<1x16x256xbf16>,
    %c0_69 = arith.constant 0 : index
    %c0_70 = arith.constant 0 : index
    %c111_71 = arith.constant 111 : index
    %85 = vector.load %arg8[%c0_69, %c0_70, %c111_71] : memref<1x16x512xbf16, #tpu.memory_space<vmem>>, vector<1x16x256xbf16>
    %86 = vector.shape_cast %85 : vector<1x16x256xbf16> to vector<16x256xbf16>
    %c0_72 = arith.constant 0 : index
    %c0_73 = arith.constant 0 : index
    %87 = vector.load %arg5[%c0_72, %c0_73] : memref<2x256xf32, #tpu.memory_space<vmem>>, vector<1x256xf32>
    %88 = arith.extf %86 : vector<16x256xbf16> to vector<16x256xf32>
    %89 = vector.broadcast %87 : vector<1x256xf32> to vector<16x256xf32>
    %90 = arith.mulf %88, %89 : vector<16x256xf32>
    %91 = arith.truncf %90 : vector<16x256xf32> to vector<16x256xbf16>
    %c0_74 = arith.constant 0 : index
    %c0_75 = arith.constant 0 : index
    %92 = vector.load %arg9[%c0_74, %c0_75] : memref<144x256xbf16, #tpu.memory_space<vmem>>, vector<16x256xbf16>
    tpu.vector_store %arg9[%c0_74, %c0_75], %91 {strides = array<i32>} : memref<144x256xbf16, #tpu.memory_space<vmem>>, vector<16x256xbf16>,
    %c0_76 = arith.constant 0 : index
    %c0_77 = arith.constant 0 : index
    %c112_78 = arith.constant 112 : index
    %93 = vector.load %arg8[%c0_76, %c0_77, %c112_78] : memref<1x16x512xbf16, #tpu.memory_space<vmem>>, vector<1x16x256xbf16>
    %94 = vector.shape_cast %93 : vector<1x16x256xbf16> to vector<16x256xbf16>
    %c16_79 = arith.constant 16 : index
    %c0_80 = arith.constant 0 : index
    %95 = vector.load %arg9[%c16_79, %c0_80] : memref<144x256xbf16, #tpu.memory_space<vmem>>, vector<16x256xbf16>
    tpu.vector_store %arg9[%c16_79, %c0_80], %94 {strides = array<i32>} : memref<144x256xbf16, #tpu.memory_space<vmem>>, vector<16x256xbf16>,
    %c0_81 = arith.constant 0 : index
    %c0_82 = arith.constant 0 : index
    %c113_83 = arith.constant 113 : index
    %96 = vector.load %arg8[%c0_81, %c0_82, %c113_83] : memref<1x16x512xbf16, #tpu.memory_space<vmem>>, vector<1x16x256xbf16>
    %97 = vector.shape_cast %96 : vector<1x16x256xbf16> to vector<16x256xbf16>
    %c1_84 = arith.constant 1 : index
    %c0_85 = arith.constant 0 : index
    %98 = vector.load %arg5[%c1_84, %c0_85] : memref<2x256xf32, #tpu.memory_space<vmem>>, vector<1x256xf32>
    %99 = arith.extf %97 : vector<16x256xbf16> to vector<16x256xf32>
    %100 = vector.broadcast %98 : vector<1x256xf32> to vector<16x256xf32>
    %101 = arith.mulf %99, %100 : vector<16x256xf32>
    %102 = arith.truncf %101 : vector<16x256xf32> to vector<16x256xbf16>
    %c32_86 = arith.constant 32 : index
    %c0_87 = arith.constant 0 : index
    %103 = vector.load %arg9[%c32_86, %c0_87] : memref<144x256xbf16, #tpu.memory_space<vmem>>, vector<16x256xbf16>
    tpu.vector_store %arg9[%c32_86, %c0_87], %102 {strides = array<i32>} : memref<144x256xbf16, #tpu.memory_space<vmem>>, vector<16x256xbf16>,
    %c0_88 = arith.constant 0 : index
    %c0_89 = arith.constant 0 : index
    %c127_90 = arith.constant 127 : index
    %104 = vector.load %arg8[%c0_88, %c0_89, %c127_90] : memref<1x16x512xbf16, #tpu.memory_space<vmem>>, vector<1x16x256xbf16>
    %105 = vector.shape_cast %104 : vector<1x16x256xbf16> to vector<16x256xbf16>
    %c0_91 = arith.constant 0 : index
    %c0_92 = arith.constant 0 : index
    %106 = vector.load %arg5[%c0_91, %c0_92] : memref<2x256xf32, #tpu.memory_space<vmem>>, vector<1x256xf32>
    %107 = arith.extf %105 : vector<16x256xbf16> to vector<16x256xf32>
    %108 = vector.broadcast %106 : vector<1x256xf32> to vector<16x256xf32>
    %109 = arith.mulf %107, %108 : vector<16x256xf32>
    %110 = arith.truncf %109 : vector<16x256xf32> to vector<16x256xbf16>
    %c48_93 = arith.constant 48 : index
    %c0_94 = arith.constant 0 : index
    %111 = vector.load %arg9[%c48_93, %c0_94] : memref<144x256xbf16, #tpu.memory_space<vmem>>, vector<16x256xbf16>
    tpu.vector_store %arg9[%c48_93, %c0_94], %110 {strides = array<i32>} : memref<144x256xbf16, #tpu.memory_space<vmem>>, vector<16x256xbf16>,
    %c0_95 = arith.constant 0 : index
    %c0_96 = arith.constant 0 : index
    %c128_97 = arith.constant 128 : index
    %112 = vector.load %arg8[%c0_95, %c0_96, %c128_97] : memref<1x16x512xbf16, #tpu.memory_space<vmem>>, vector<1x16x256xbf16>
    %113 = vector.shape_cast %112 : vector<1x16x256xbf16> to vector<16x256xbf16>
    %c64_98 = arith.constant 64 : index
    %c0_99 = arith.constant 0 : index
    %114 = vector.load %arg9[%c64_98, %c0_99] : memref<144x256xbf16, #tpu.memory_space<vmem>>, vector<16x256xbf16>
    tpu.vector_store %arg9[%c64_98, %c0_99], %113 {strides = array<i32>} : memref<144x256xbf16, #tpu.memory_space<vmem>>, vector<16x256xbf16>,
    %c0_100 = arith.constant 0 : index
    %c0_101 = arith.constant 0 : index
    %c129_102 = arith.constant 129 : index
    %115 = vector.load %arg8[%c0_100, %c0_101, %c129_102] : memref<1x16x512xbf16, #tpu.memory_space<vmem>>, vector<1x16x256xbf16>
    %116 = vector.shape_cast %115 : vector<1x16x256xbf16> to vector<16x256xbf16>
    %c1_103 = arith.constant 1 : index
    %c0_104 = arith.constant 0 : index
    %117 = vector.load %arg5[%c1_103, %c0_104] : memref<2x256xf32, #tpu.memory_space<vmem>>, vector<1x256xf32>
    %118 = arith.extf %116 : vector<16x256xbf16> to vector<16x256xf32>
    %119 = vector.broadcast %117 : vector<1x256xf32> to vector<16x256xf32>
    %120 = arith.mulf %118, %119 : vector<16x256xf32>
    %121 = arith.truncf %120 : vector<16x256xf32> to vector<16x256xbf16>
    %c80_105 = arith.constant 80 : index
    %c0_106 = arith.constant 0 : index
    %122 = vector.load %arg9[%c80_105, %c0_106] : memref<144x256xbf16, #tpu.memory_space<vmem>>, vector<16x256xbf16>
    tpu.vector_store %arg9[%c80_105, %c0_106], %121 {strides = array<i32>} : memref<144x256xbf16, #tpu.memory_space<vmem>>, vector<16x256xbf16>,
    %c0_107 = arith.constant 0 : index
    %c0_108 = arith.constant 0 : index
    %c143_109 = arith.constant 143 : index
    %123 = vector.load %arg8[%c0_107, %c0_108, %c143_109] : memref<1x16x512xbf16, #tpu.memory_space<vmem>>, vector<1x16x256xbf16>
    %124 = vector.shape_cast %123 : vector<1x16x256xbf16> to vector<16x256xbf16>
    %c0_110 = arith.constant 0 : index
    %c0_111 = arith.constant 0 : index
    %125 = vector.load %arg5[%c0_110, %c0_111] : memref<2x256xf32, #tpu.memory_space<vmem>>, vector<1x256xf32>
    %126 = arith.extf %124 : vector<16x256xbf16> to vector<16x256xf32>
    %127 = vector.broadcast %125 : vector<1x256xf32> to vector<16x256xf32>
    %128 = arith.mulf %126, %127 : vector<16x256xf32>
    %129 = arith.truncf %128 : vector<16x256xf32> to vector<16x256xbf16>
    %c96_112 = arith.constant 96 : index
    %c0_113 = arith.constant 0 : index
    %130 = vector.load %arg9[%c96_112, %c0_113] : memref<144x256xbf16, #tpu.memory_space<vmem>>, vector<16x256xbf16>
    tpu.vector_store %arg9[%c96_112, %c0_113], %129 {strides = array<i32>} : memref<144x256xbf16, #tpu.memory_space<vmem>>, vector<16x256xbf16>,
    %c0_114 = arith.constant 0 : index
    %c0_115 = arith.constant 0 : index
    %c144_116 = arith.constant 144 : index
    %131 = vector.load %arg8[%c0_114, %c0_115, %c144_116] : memref<1x16x512xbf16, #tpu.memory_space<vmem>>, vector<1x16x256xbf16>
    %132 = vector.shape_cast %131 : vector<1x16x256xbf16> to vector<16x256xbf16>
    %c112_117 = arith.constant 112 : index
    %c0_118 = arith.constant 0 : index
    %133 = vector.load %arg9[%c112_117, %c0_118] : memref<144x256xbf16, #tpu.memory_space<vmem>>, vector<16x256xbf16>
    tpu.vector_store %arg9[%c112_117, %c0_118], %132 {strides = array<i32>} : memref<144x256xbf16, #tpu.memory_space<vmem>>, vector<16x256xbf16>,
    %c0_119 = arith.constant 0 : index
    %c0_120 = arith.constant 0 : index
    %c145_121 = arith.constant 145 : index
    %134 = vector.load %arg8[%c0_119, %c0_120, %c145_121] : memref<1x16x512xbf16, #tpu.memory_space<vmem>>, vector<1x16x256xbf16>
    %135 = vector.shape_cast %134 : vector<1x16x256xbf16> to vector<16x256xbf16>
    %c1_122 = arith.constant 1 : index
    %c0_123 = arith.constant 0 : index
    %136 = vector.load %arg5[%c1_122, %c0_123] : memref<2x256xf32, #tpu.memory_space<vmem>>, vector<1x256xf32>
    %137 = arith.extf %135 : vector<16x256xbf16> to vector<16x256xf32>
    %138 = vector.broadcast %136 : vector<1x256xf32> to vector<16x256xf32>
    %139 = arith.mulf %137, %138 : vector<16x256xf32>
    %140 = arith.truncf %139 : vector<16x256xf32> to vector<16x256xbf16>
    %c128_124 = arith.constant 128 : index
    %c0_125 = arith.constant 0 : index
    %141 = vector.load %arg9[%c128_124, %c0_125] : memref<144x256xbf16, #tpu.memory_space<vmem>>, vector<16x256xbf16>
    tpu.vector_store %arg9[%c128_124, %c0_125], %140 {strides = array<i32>} : memref<144x256xbf16, #tpu.memory_space<vmem>>, vector<16x256xbf16>,
    %c1_126 = arith.constant 1 : index
    %c0_127 = arith.constant 0 : index
    %c0_128 = arith.constant 0 : index
    %142 = vector.load %arg3[%c1_126, %c0_127, %c0_128] : memref<2x16x144xbf16, #tpu.memory_space<vmem>>, vector<1x16x144xbf16>
    %143 = vector.shape_cast %142 : vector<1x16x144xbf16> to vector<16x144xbf16>
    %c0_129 = arith.constant 0 : index
    %c0_130 = arith.constant 0 : index
    %144 = vector.load %arg9[%c0_129, %c0_130] : memref<144x256xbf16, #tpu.memory_space<vmem>>, vector<144x256xbf16>
    %cst_131 = arith.constant dense<0.000000e+00> : vector<16x256xf32>
    %145 = tpu.matmul %143, %144, %cst_131 {dimension_numbers = #tpu.dot_dimension_numbers<[1], [0], [0], [1], [0, 0, 1, 1], [], []>} : vector<16x144xbf16>, vector<144x256xbf16>, vector<16x256xf32> -> vector<16x256xf32>
    %c0_132 = arith.constant 0 : index
    %c1_133 = arith.constant 1 : index
    %146 = vector.load %arg4[%c0_132, %c1_133] : memref<16x2xf32, #tpu.memory_space<vmem>>, vector<16x1xf32>
    %147 = vector.broadcast %146 : vector<16x1xf32> to vector<16x256xf32>
    %148 = arith.addf %145, %147 : vector<16x256xf32>
    %c0_134 = arith.constant 0 : index
    %c0_135 = arith.constant 0 : index
    %c128_136 = arith.constant 128 : index
    %149 = vector.load %arg7[%c0_134, %c0_135, %c128_136] : memref<1x16x512xf32, #tpu.memory_space<vmem>>, vector<1x16x256xf32>
    %150 = vector.shape_cast %149 : vector<1x16x256xf32> to vector<16x256xf32>
    %151 = arith.addf %148, %150 : vector<16x256xf32>
    %cst_137 = arith.constant 0.000000e+00 : f32
    %152 = vector.broadcast %cst_137 : f32 to vector<16x256xf32>
    %153 = arith.maximumf %151, %152 : vector<16x256xf32>
    %154 = vector.extract_strided_slice %153 {offsets = [0, 0], sizes = [4, 256], strides = [1, 1]} : vector<16x256xf32> to vector<4x256xf32>
    %c0_138 = arith.constant 0 : index
    %c0_139 = arith.constant 0 : index
    %c0_140 = arith.constant 0 : index
    %155 = vector.load %arg6[%c0_138, %c0_139, %c0_140] : memref<1x4x256xf32, #tpu.memory_space<vmem>>, vector<1x4x256xf32>
    %156 = vector.shape_cast %155 : vector<1x4x256xf32> to vector<4x256xf32>
    %157 = vector.shape_cast %154 : vector<4x256xf32> to vector<1x4x256xf32>
    tpu.vector_store %arg6[%c0_138, %c0_139, %c0_140], %157 {strides = array<i32>} : memref<1x4x256xf32, #tpu.memory_space<vmem>>, vector<1x4x256xf32>,
    return
  }
  func.func @transform_0(%arg0: i32) -> (i32, i32, i32) {
    %c0_i32 = arith.constant 0 : i32
    %c0_i32_0 = arith.constant 0 : i32
    %c0_i32_1 = arith.constant 0 : i32
    return %arg0, %c0_i32, %c0_i32_0 : i32, i32, i32
  }
  func.func @transform_1(%arg0: i32) -> (i32, i32) {
    %c0_i32 = arith.constant 0 : i32
    %c0_i32_0 = arith.constant 0 : i32
    %c0_i32_1 = arith.constant 0 : i32
    return %c0_i32, %c0_i32_0 : i32, i32
  }
  func.func @transform_2(%arg0: i32) -> (i32, i32, i32) {
    %c0_i32 = arith.constant 0 : i32
    %c0_i32_0 = arith.constant 0 : i32
    %c0_i32_1 = arith.constant 0 : i32
    %c0_i32_2 = arith.constant 0 : i32
    return %c0_i32, %c0_i32_0, %c0_i32_1 : i32, i32, i32
  }
  func.func @transform_3(%arg0: i32) -> (i32, i32) {
    %c0_i32 = arith.constant 0 : i32
    %c0_i32_0 = arith.constant 0 : i32
    %c0_i32_1 = arith.constant 0 : i32
    return %c0_i32, %c0_i32_0 : i32, i32
  }
  func.func @transform_4(%arg0: i32) -> (i32, i32) {
    %c0_i32 = arith.constant 0 : i32
    %c0_i32_0 = arith.constant 0 : i32
    %c0_i32_1 = arith.constant 0 : i32
    return %c0_i32, %c0_i32_0 : i32, i32
  }
  func.func @transform_5(%arg0: i32) -> (i32, i32, i32) {
    %c0_i32 = arith.constant 0 : i32
    %c0_i32_0 = arith.constant 0 : i32
    %c0_i32_1 = arith.constant 0 : i32
    return %arg0, %c0_i32, %c0_i32_0 : i32, i32, i32
  }
}

</mosaic_0001>

<llo_original>
// kernel: tpu_custom_call.1
$region0: #{tpu_custom_call.1}
  #allocation0 [shape = 'u32[]', space=smem, size = 0x4, offset = 0x4, fixed_abs, tag = 'smem constant byte address 0x4 - core index']
  #allocation1 [shape = 'u32[144,128]{1,0:T(1,128)}', space=vmem, size = 0x12000, scoped, tag = 'internal scratch']
  #allocation2 [shape = 'f32[1,16,512]{2,1,0:T(8,128)}', space=vmem, size = 0x8000, scoped, tag = 'scratch operand']
  #allocation3 [shape = 'bf16[1,16,512]{2,1,0:T(16,128)(2,1)}', space=vmem, size = 0x4000, scoped, tag = 'scratch operand']
  #allocation4 [shape = 'bf16[144,256]{1,0:T(16,128)(2,1)}', space=vmem, size = 0x12000, scoped, tag = 'scratch operand']
  %s0 = inlined_call_operand.vmem [shape: f32[2,4,256], index: 0, kind: input, shape index: {}]
  %s1 = inlined_call_operand.hbm [shape: f32[4,256], index: 1, kind: input, shape index: {}]
  %s2 = inlined_call_operand.hbm [shape: bf16[2,16,144], index: 2, kind: input, shape index: {}]
  %s3 = inlined_call_operand.vmem [shape: f32[16,2], index: 3, kind: input, shape index: {}]
  %s4 = inlined_call_operand.vmem [shape: f32[2,256], index: 4, kind: input, shape index: {}]
  %s5 = inlined_call_operand.hbm [shape: f32[2,4,256], index: 5, kind: output, shape index: {}]
  %s6 = sld [smem:[#allocation0]]
  $region61: #{tpu_custom_call.1} parent=0
    _
  %s8 = ssub.s32 1, %s6
  %s9 = scalar_select 0, %s8, %s6
  $region1: #{tpu_custom_call.1} parent=0
    #allocation5 [shape = 'u8[4096]{0}', space=vmem, size = 0x1000, scoped, tag = 'input window, operand 1, single buffered']
    #allocation6 [shape = 's32[2]{0}', space=sflag, size = 0x8, scoped, tag = 'scoped memory for tpu_custom_call.1']
    #allocation7 [shape = 's32[2]{0}', space=sflag, size = 0x8, scoped, tag = 'scoped memory for tpu_custom_call.1']
    #allocation8 [shape = 'u8[16384]{0}', space=vmem, size = 0x4000, scoped, tag = 'input window, operand 2, single buffered']
    #allocation9 [shape = 's32[1]{0}', space=sflag, size = 0x4, scoped, tag = 'scoped memory for tpu_custom_call.1']
    #allocation10 [shape = 'u8[8192]{0}', space=vmem, size = 0x2000, scoped, tag = 'output window, operand 0']
    %10 = vsyncpa [#allocation6], 0
    %11 = vsyncpa [#allocation9], 0
    %12 = vsyncpa [#allocation7], 0
    %s13 = scalar_lea.sflag [#allocation7], 1
    %14 = vsyncpa %s13, 0
    loop: start=0, step=1, limit=4
    $region2: #{tpu_custom_call.1} parent=1 // loop_pre_header
      _
    $region3: #{tpu_custom_call.1} parent=1 // loop_header
      %s16 = sphi 0, %s20
      %p17 = scmp.ge.s32.totalorder %s16, 4
      %s26 = sphi 0, %s28
      %s29 = sphi 0, %s26
      %s30 = sphi 0, %s29
      %s46 = sphi 0, %s30
      %s50 = sphi 0, %s50
      %s52 = sphi 0, %s50
      %s53 = sphi 0, %s52
      %s67 = sphi 0, %s53
      %s71 = sphi 0, %s71
      %s73 = sphi 0, %s71
      %s74 = sphi 0, %s73
      %s88 = sphi 0, %s74
      %s92 = sphi 0, %s92
      %s94 = sphi 0, %s92
      %s95 = sphi 0, %s94
      %s109 = sphi 0, %s95
      %s113 = sphi 0, %s113
      %s115 = sphi 0, %s113
      %s116 = sphi 0, %s115
      %s130 = sphi 0, %s116
      %s136 = sphi 0, %s138
      %s139 = sphi 0, %s136
      %s140 = sphi 0, %s139
      %s156 = sphi 0, %s140
    $region4: #{tpu_custom_call.1} parent=1 // loop_header_branch
      %19 = sbr.rel (%p17) target = $region8
    $region5: #{tpu_custom_call.1} parent=1 // loop_body
      %s21 = ssub.s32 %s16, 1
      %s22 = ssub.s32 %s16, 2
      %s23 = sadd.s32 %s16, 1
      %s24 = ssub.s32 %s16, %s23
      %p25 = scmp.eq.s32.totalorder %s24, 0
      %s27 = sadd.s32 %s26, 1
      %s28 = scalar_select %p25, %s26, %s27
      %p31 = pneg %p25
      %p32 = scmp.eq.s32.totalorder %s16, 1
      %p33 = por %p31, %p32
      %p34 = scmp.ne.s32.totalorder %s26, %s29
      %p35 = scmp.eq.s32.totalorder %s16, 0
      %p36 = por %p34, %p35
      %p37 = scmp.ne.s32.totalorder %s26, %s29
      %p38 = scmp.eq.s32.totalorder %s21, 1
      %p39 = por %p37, %p38
      %p40 = scmp.ne.s32.totalorder %s29, %s30
      %p41 = scmp.eq.s32.totalorder %s21, 0
      %p42 = por %p40, %p41
      %p43 = scmp.ne.s32.totalorder %s29, %s30
      %p44 = scmp.eq.s32.totalorder %s22, 1
      %p45 = por %p43, %p44
      %p47 = scmp.ne.s32.totalorder %s30, %s46
      %p48 = scmp.eq.s32.totalorder %s22, 0
      %p49 = por %p47, %p48
      %s51 = sadd.s32 %s50, 1
      %p54 = scmp.eq.s32.totalorder %s16, 1
      %p55 = scmp.ne.s32.totalorder %s50, %s52
      %p56 = scmp.eq.s32.totalorder %s16, 0
      %p57 = por %p55, %p56
      %p58 = scmp.ne.s32.totalorder %s50, %s52
      %p59 = scmp.eq.s32.totalorder %s21, 1
      %p60 = por %p58, %p59
      %p61 = scmp.ne.s32.totalorder %s52, %s53
      %p62 = scmp.eq.s32.totalorder %s21, 0
      %p63 = por %p61, %p62
      %p64 = scmp.ne.s32.totalorder %s52, %s53
      %p65 = scmp.eq.s32.totalorder %s22, 1
      %p66 = por %p64, %p65
      %p68 = scmp.ne.s32.totalorder %s53, %s67
      %p69 = scmp.eq.s32.totalorder %s22, 0
      %p70 = por %p68, %p69
      %s72 = sadd.s32 %s71, 1
      %p75 = scmp.eq.s32.totalorder %s16, 1
      %p76 = scmp.ne.s32.totalorder %s71, %s73
      %p77 = scmp.eq.s32.totalorder %s16, 0
      %p78 = por %p76, %p77
      %p79 = scmp.ne.s32.totalorder %s71, %s73
      %p80 = scmp.eq.s32.totalorder %s21, 1
      %p81 = por %p79, %p80
      %p82 = scmp.ne.s32.totalorder %s73, %s74
      %p83 = scmp.eq.s32.totalorder %s21, 0
      %p84 = por %p82, %p83
      %p85 = scmp.ne.s32.totalorder %s73, %s74
      %p86 = scmp.eq.s32.totalorder %s22, 1
      %p87 = por %p85, %p86
      %p89 = scmp.ne.s32.totalorder %s74, %s88
      %p90 = scmp.eq.s32.totalorder %s22, 0
      %p91 = por %p89, %p90
      %s93 = sadd.s32 %s92, 1
      %p96 = scmp.eq.s32.totalorder %s16, 1
      %p97 = scmp.ne.s32.totalorder %s92, %s94
      %p98 = scmp.eq.s32.totalorder %s16, 0
      %p99 = por %p97, %p98
      %p100 = scmp.ne.s32.totalorder %s92, %s94
      %p101 = scmp.eq.s32.totalorder %s21, 1
      %p102 = por %p100, %p101
      %p103 = scmp.ne.s32.totalorder %s94, %s95
      %p104 = scmp.eq.s32.totalorder %s21, 0
      %p105 = por %p103, %p104
      %p106 = scmp.ne.s32.totalorder %s94, %s95
      %p107 = scmp.eq.s32.totalorder %s22, 1
      %p108 = por %p106, %p107
      %p110 = scmp.ne.s32.totalorder %s95, %s109
      %p111 = scmp.eq.s32.totalorder %s22, 0
      %p112 = por %p110, %p111
      %s114 = sadd.s32 %s113, 1
      %p117 = scmp.eq.s32.totalorder %s16, 1
      %p118 = scmp.ne.s32.totalorder %s113, %s115
      %p119 = scmp.eq.s32.totalorder %s16, 0
      %p120 = por %p118, %p119
      %p121 = scmp.ne.s32.totalorder %s113, %s115
      %p122 = scmp.eq.s32.totalorder %s21, 1
      %p123 = por %p121, %p122
      %p124 = scmp.ne.s32.totalorder %s115, %s116
      %p125 = scmp.eq.s32.totalorder %s21, 0
      %p126 = por %p124, %p125
      %p127 = scmp.ne.s32.totalorder %s115, %s116
      %p128 = scmp.eq.s32.totalorder %s22, 1
      %p129 = por %p127, %p128
      %p131 = scmp.ne.s32.totalorder %s116, %s130
      %p132 = scmp.eq.s32.totalorder %s22, 0
      %p133 = por %p131, %p132
      %s134 = ssub.s32 %s16, %s23
      %p135 = scmp.eq.s32.totalorder %s134, 0
      %s137 = sadd.s32 %s136, 1
      %s138 = scalar_select %p135, %s136, %s137
      %p141 = pneg %p135
      %p142 = scmp.eq.s32.totalorder %s16, 1
      %p143 = por %p141, %p142
      %p144 = scmp.ne.s32.totalorder %s136, %s139
      %p145 = scmp.eq.s32.totalorder %s16, 0
      %p146 = por %p144, %p145
      %p147 = scmp.ne.s32.totalorder %s136, %s139
      %p148 = scmp.eq.s32.totalorder %s21, 1
      %p149 = por %p147, %p148
      %p150 = scmp.ne.s32.totalorder %s139, %s140
      %p151 = scmp.eq.s32.totalorder %s21, 0
      %p152 = por %p150, %p151
      %p153 = scmp.ne.s32.totalorder %s139, %s140
      %p154 = scmp.eq.s32.totalorder %s22, 1
      %p155 = por %p153, %p154
      %p157 = scmp.ne.s32.totalorder %s140, %s156
      %p158 = scmp.eq.s32.totalorder %s22, 0
      %p159 = por %p157, %p158
      %p160 = scmp.le.s32.totalorder 1, %s16
      %p161 = scmp.lt.s32.totalorder %s16, 3
      %p162 = pnand %p160, %p161
      %p163 = pneg %p162
      // Predicated region
      $region9: #{tpu_custom_call.1} parent=5 // pred_check
        _
      $region10: #{tpu_custom_call.1} parent=5 // pred_check_branch
        %165 = sbr.rel (%p162) target = $region12
      $region11: #{tpu_custom_call.1} parent=5 // pred_region
        %s166 = ssub.s32 %s16, 1
        // Predicated region
        $region13: #{tpu_custom_call.1} parent=11 // pred_check
          %p167 = pneg %p63
        $region14: #{tpu_custom_call.1} parent=11 // pred_check_branch
          %169 = sbr.rel (%p167) target = $region16
        $region15: #{tpu_custom_call.1} parent=11 // pred_region
          %s171 = ssub.s32 128, 128
          %172 = vsyncadd [#allocation6], %s171
          %s174 = sshll.u32 [#allocation5], 4
          %s175 = int_to_ptr.vmem [resolvable:$true] %s174
          %177 = dma.hbm_to_vmem [thread:$0]  %s1, 128, %s175, [#allocation6]
        $region16: #{tpu_custom_call.1} parent=11 // pred_fallthru
          _
        // Predicated region
        $region17: #{tpu_custom_call.1} parent=11 // pred_check
          %p178 = pneg %p84
        $region18: #{tpu_custom_call.1} parent=11 // pred_check_branch
          %180 = sbr.rel (%p178) target = $region20
        $region19: #{tpu_custom_call.1} parent=11 // pred_region
          %s182 = ssub.s32 512, 512
          %183 = vsyncadd [#allocation9], %s182
          %s184 = sshll.u32 [#allocation8], 4
          %s185 = int_to_ptr.vmem [resolvable:$true] %s184
          %190 = dma.hbm_to_vmem [thread:$0]  %s2, 512, %s185, [#allocation9], 128, 128, 8
        $region20: #{tpu_custom_call.1} parent=11 // pred_fallthru
          _
        // Predicated region
        $region21: #{tpu_custom_call.1} parent=11 // pred_check
          %p191 = pneg %p105
        $region22: #{tpu_custom_call.1} parent=11 // pred_check_branch
          %193 = sbr.rel (%p191) target = $region24
        $region23: #{tpu_custom_call.1} parent=11 // pred_region
          _
        $region24: #{tpu_custom_call.1} parent=11 // pred_fallthru
          _
        // Predicated region
        $region25: #{tpu_custom_call.1} parent=11 // pred_check
          %p194 = pneg %p126
        $region26: #{tpu_custom_call.1} parent=11 // pred_check_branch
          %196 = sbr.rel (%p194) target = $region28
        $region27: #{tpu_custom_call.1} parent=11 // pred_region
          _
        $region28: #{tpu_custom_call.1} parent=11 // pred_fallthru
          _
      $region12: #{tpu_custom_call.1} parent=5 // pred_fallthru
        _
      %p197 = scmp.lt.s32.totalorder %s16, 2
      // Predicated region
      $region29: #{tpu_custom_call.1} parent=5 // pred_check
        %p198 = pneg %p197
      $region30: #{tpu_custom_call.1} parent=5 // pred_check_branch
        %200 = sbr.rel (%p198) target = $region32
      $region31: #{tpu_custom_call.1} parent=5 // pred_region
        // Predicated region
        $region33: #{tpu_custom_call.1} parent=31 // pred_check
          %p201 = pneg %p36
        $region34: #{tpu_custom_call.1} parent=31 // pred_check_branch
          %203 = sbr.rel (%p201) target = $region36
        $region35: #{tpu_custom_call.1} parent=31 // pred_region
          %p204 = scmp.lt.s32.totalorder %s16, 1
          %s205 = scalar_select %p204, %s16, 1
          %s206 = smul.addr %s205, 2
          %s207 = smul.addr %s206, 4
          %s208 = scalar_lea.vmem %s0, %s207
        $region36: #{tpu_custom_call.1} parent=31 // pred_fallthru
          _
      $region32: #{tpu_custom_call.1} parent=5 // pred_fallthru
        _
      %p209 = scmp.le.s32.totalorder 1, %s16
      %p210 = scmp.lt.s32.totalorder %s16, 3
      %p211 = pnand %p209, %p210
      %p212 = pneg %p211
      // Predicated region
      $region37: #{tpu_custom_call.1} parent=5 // pred_check
        _
      $region38: #{tpu_custom_call.1} parent=5 // pred_check_branch
        %214 = sbr.rel (%p211) target = $region40
      $region39: #{tpu_custom_call.1} parent=5 // pred_region
        %s215 = ssub.s32 %s16, 1
        // Predicated region
        $region41: #{tpu_custom_call.1} parent=39 // pred_check
          %p216 = pneg %p63
        $region42: #{tpu_custom_call.1} parent=39 // pred_check_branch
          %218 = sbr.rel (%p216) target = $region44
        $region43: #{tpu_custom_call.1} parent=39 // pred_region
          %219 = dma.done [#allocation6], 128
        $region44: #{tpu_custom_call.1} parent=39 // pred_fallthru
          _
        // Predicated region
        $region45: #{tpu_custom_call.1} parent=39 // pred_check
          %p220 = pneg %p84
        $region46: #{tpu_custom_call.1} parent=39 // pred_check_branch
          %222 = sbr.rel (%p220) target = $region48
        $region47: #{tpu_custom_call.1} parent=39 // pred_region
          %223 = dma.done [#allocation9], 512
        $region48: #{tpu_custom_call.1} parent=39 // pred_fallthru
          _
        %p224 = scmp.lt.s32.totalorder %s21, 1
        %s225 = scalar_select %p224, %s21, 1
        %s226 = smul.addr %s225, 2
        %s227 = smul.addr %s226, 4
        %s228 = scalar_lea.vmem %s0, %s227
        %p229 = pneg %p42
        %p230 = pneg %p39
        %p231 = pneg %p63
        %p232 = pneg %p60
        %p233 = pneg %p84
        %p234 = pneg %p81
        %p235 = pneg %p105
        %p236 = pneg %p102
        %p237 = pneg %p126
        %p238 = pneg %p123
        %p239 = pneg %p152
        %p240 = pneg %p149
        %s241 = sand.u32 %s139, 1
        %s242 = scalar_lea.sflag [#allocation7], %s241
        %s243 = sand.u32 %s139, 1
        %s244 = smul.addr %s243, 8
        %s245 = scalar_lea.vmem [#allocation10], %s244
        %p246 = scmp.lt.s32.totalorder %s21, 1
        %s247 = scalar_select %p246, %s21, 1
        %s248 = smul.addr %s247, 2
        %s249 = smul.addr %s248, 4
        %s250 = scalar_lea.vmem %s0, %s249
        %252 = vst [vmem:[#allocation2] sm:$0xff] 0.0
        %253 = vst [vmem:[#allocation2 + $0x8] sm:$0xff] 0.0
        %254 = vst [vmem:[#allocation2 + $0x10] sm:$0xff] 0.0
        %255 = vst [vmem:[#allocation2 + $0x18] sm:$0xff] 0.0
        %256 = vst [vmem:[#allocation2 + $0x20] sm:$0xff] 0.0
        %257 = vst [vmem:[#allocation2 + $0x28] sm:$0xff] 0.0
        %258 = vst [vmem:[#allocation2 + $0x30] sm:$0xff] 0.0
        %259 = vst [vmem:[#allocation2 + $0x38] sm:$0xff] 0.0
        %v260 = vld [vmem:[%s250] sm:$0xff]
        %v261 = vld [vmem:[#allocation5] sm:$0xff]
        %v262 = vadd.f32 %v260, %v261
        %v264 = vcombine.high %v262, %v262
        %266 = vst [vmem:[#allocation2 + $0x8] sm:$0xf] %v262
        %267 = vst [vmem:[#allocation2 + $0x10] sm:$0xf] %v264
        %268 = vst [vmem:[#allocation3] sm:$0xff] 0
        %269 = vst [vmem:[#allocation3 + $0x18] sm:$0xff] 0
        %v270 = vld [vmem:[#allocation2] sm:$0xff]
        %v271 = vld [vmem:[#allocation2 + $0x8] sm:$0xff]
        %v272 = vld [vmem:[#allocation2 + $0x10] sm:$0xff]
        %v273 = vld [vmem:[#allocation2 + $0x20] sm:$0xff]
        %v274 = vld [vmem:[#allocation2 + $0x28] sm:$0xff]
        %v275 = vld [vmem:[#allocation2 + $0x30] sm:$0xff]
        %v276 = vld [vmem:[%s4] ss:$2 sm:$0x3]
        %v278 = vlaneseq
        %v279 = vshrl.u32 %v278, 7
        %v280 = vsub.s32 0, %v279
        %v281 = vrot.slane %v276, %v280
        %v282 = vlaneseq
        %v283 = vshrl.u32 %v282, 7
        %v284 = vsub.s32 1, %v283
        %v285 = vrot.slane %v276, %v284
        %286 = vrot.lane.b32.xlu0 %v281, 111
        %v287 = vpop.permute.xlu0 %286
        %288 = vrot.lane.b32.xlu0 %v285, 111
        %v289 = vpop.permute.xlu0 %288
        %vm290 = vcmask 908288
        %v291 = vsel %vm290, %v287, %v289
        %v295 = vmul.f32 %v270, %v287
        %v296 = vmul.f32 %v271, %v291
        %v297 = vmul.f32 %v272, %v289
        %v298 = vmul.f32 %v273, %v287
        %v299 = vmul.f32 %v274, %v291
        %v300 = vmul.f32 %v275, %v289
        %v301 = vpack.c.bf16 %v298, %v295
        %v302 = vpack.c.bf16 %v299, %v296
        %v303 = vpack.c.bf16 %v300, %v297
        %307 = vrot.lane.b32.xlu0 %v301, 17
        %v308 = vpop.permute.xlu0 %307
        %309 = vrot.lane.b32.xlu0 %v302, 17
        %v310 = vpop.permute.xlu0 %309
        %311 = vrot.lane.b32.xlu0 %v303, 17
        %v312 = vpop.permute.xlu0 %311
        %vm313 = vcmask 138240
        %v314 = vsel %vm313, %v308, %v310
        %v315 = vsel %vm313, %v310, %v312
        %318 = vst [vmem:[#allocation4] sm:$0xff] %v314
        %319 = vst [vmem:[#allocation4 + $0x8] sm:$0xff] %v315
        %v320 = vld [vmem:[#allocation2] sm:$0xff]
        %v321 = vld [vmem:[#allocation2 + $0x8] sm:$0xff]
        %v322 = vld [vmem:[#allocation2 + $0x10] sm:$0xff]
        %v323 = vld [vmem:[#allocation2 + $0x20] sm:$0xff]
        %v324 = vld [vmem:[#allocation2 + $0x28] sm:$0xff]
        %v325 = vld [vmem:[#allocation2 + $0x30] sm:$0xff]
        %v326 = vpack.c.bf16 %v323, %v320
        %v327 = vpack.c.bf16 %v324, %v321
        %v328 = vpack.c.bf16 %v325, %v322
        %332 = vrot.lane.b32.xlu0 %v326, 16
        %v333 = vpop.permute.xlu0 %332
        %334 = vrot.lane.b32.xlu0 %v327, 16
        %v335 = vpop.permute.xlu0 %334
        %336 = vrot.lane.b32.xlu0 %v328, 16
        %v337 = vpop.permute.xlu0 %336
        %vm338 = vcmask 130048
        %v339 = vsel %vm338, %v333, %v335
        %v340 = vsel %vm338, %v335, %v337
        %343 = vst [vmem:[#allocation4 + $0x10] sm:$0xff] %v339
        %344 = vst [vmem:[#allocation4 + $0x18] sm:$0xff] %v340
        %v345 = vld [vmem:[#allocation2] sm:$0xff]
        %v346 = vld [vmem:[#allocation2 + $0x8] sm:$0xff]
        %v347 = vld [vmem:[#allocation2 + $0x10] sm:$0xff]
        %v348 = vld [vmem:[#allocation2 + $0x20] sm:$0xff]
        %v349 = vld [vmem:[#allocation2 + $0x28] sm:$0xff]
        %v350 = vld [vmem:[#allocation2 + $0x30] sm:$0xff]
        %s351 = scalar_lea.vmem %s4, 1
        %v352 = vld [vmem:[%s351] ss:$2 sm:$0x3]
        %v354 = vlaneseq
        %v355 = vshrl.u32 %v354, 7
        %v356 = vsub.s32 0, %v355
        %v357 = vrot.slane %v352, %v356
        %v358 = vlaneseq
        %v359 = vshrl.u32 %v358, 7
        %v360 = vsub.s32 1, %v359
        %v361 = vrot.slane %v352, %v360
        %362 = vrot.lane.b32.xlu0 %v357, 113
        %v363 = vpop.permute.xlu0 %362
        %364 = vrot.lane.b32.xlu0 %v361, 113
        %v365 = vpop.permute.xlu0 %364
        %vm366 = vcmask 924672
        %v367 = vsel %vm366, %v363, %v365
        %v371 = vmul.f32 %v345, %v363
        %v372 = vmul.f32 %v346, %v367
        %v373 = vmul.f32 %v347, %v365
        %v374 = vmul.f32 %v348, %v363
        %v375 = vmul.f32 %v349, %v367
        %v376 = vmul.f32 %v350, %v365
        %v377 = vpack.c.bf16 %v374, %v371
        %v378 = vpack.c.bf16 %v375, %v372
        %v379 = vpack.c.bf16 %v376, %v373
        %383 = vrot.lane.b32.xlu0 %v377, 15
        %v384 = vpop.permute.xlu0 %383
        %385 = vrot.lane.b32.xlu0 %v378, 15
        %v386 = vpop.permute.xlu0 %385
        %387 = vrot.lane.b32.xlu0 %v379, 15
        %v388 = vpop.permute.xlu0 %387
        %vm389 = vcmask 121856
        %v390 = vsel %vm389, %v384, %v386
        %v391 = vsel %vm389, %v386, %v388
        %394 = vst [vmem:[#allocation4 + $0x20] sm:$0xff] %v390
        %395 = vst [vmem:[#allocation4 + $0x28] sm:$0xff] %v391
        %v396 = vld [vmem:[#allocation2] sm:$0xff]
        %v397 = vld [vmem:[#allocation2 + $0x8] sm:$0xff]
        %v398 = vld [vmem:[#allocation2 + $0x10] sm:$0xff]
        %v399 = vld [vmem:[#allocation2 + $0x20] sm:$0xff]
        %v400 = vld [vmem:[#allocation2 + $0x28] sm:$0xff]
        %v401 = vld [vmem:[#allocation2 + $0x30] sm:$0xff]
        %v402 = vld [vmem:[%s4] ss:$2 sm:$0x3]
        %v404 = vlaneseq
        %v405 = vshrl.u32 %v404, 7
        %v406 = vsub.s32 0, %v405
        %v407 = vrot.slane %v402, %v406
        %v408 = vlaneseq
        %v409 = vshrl.u32 %v408, 7
        %v410 = vsub.s32 1, %v409
        %v411 = vrot.slane %v402, %v410
        %412 = vrot.lane.b32.xlu0 %v407, 127
        %v413 = vpop.permute.xlu0 %412
        %414 = vrot.lane.b32.xlu0 %v411, 127
        %v415 = vpop.permute.xlu0 %414
        %vm416 = vcmask 1039360
        %v417 = vsel %vm416, %v413, %v415
        %v421 = vmul.f32 %v396, %v413
        %v422 = vmul.f32 %v397, %v417
        %v423 = vmul.f32 %v398, %v415
        %v424 = vmul.f32 %v399, %v413
        %v425 = vmul.f32 %v400, %v417
        %v426 = vmul.f32 %v401, %v415
        %v427 = vpack.c.bf16 %v424, %v421
        %v428 = vpack.c.bf16 %v425, %v422
        %v429 = vpack.c.bf16 %v426, %v423
        %433 = vrot.lane.b32.xlu0 %v427, 1
        %v434 = vpop.permute.xlu0 %433
        %435 = vrot.lane.b32.xlu0 %v428, 1
        %v436 = vpop.permute.xlu0 %435
        %437 = vrot.lane.b32.xlu0 %v429, 1
        %v438 = vpop.permute.xlu0 %437
        %vm439 = vcmask 7168
        %v440 = vsel %vm439, %v434, %v436
        %v441 = vsel %vm439, %v436, %v438
        %444 = vst [vmem:[#allocation4 + $0x30] sm:$0xff] %v440
        %445 = vst [vmem:[#allocation4 + $0x38] sm:$0xff] %v441
        %v446 = vld [vmem:[#allocation2 + $0x8] sm:$0xff]
        %v447 = vld [vmem:[#allocation2 + $0x10] sm:$0xff]
        %v448 = vld [vmem:[#allocation2 + $0x28] sm:$0xff]
        %v449 = vld [vmem:[#allocation2 + $0x30] sm:$0xff]
        %v450 = vpack.c.bf16 %v448, %v446
        %v451 = vpack.c.bf16 %v449, %v447
        %452 = vst [vmem:[#allocation4 + $0x40] sm:$0xff] %v450
        %453 = vst [vmem:[#allocation4 + $0x48] sm:$0xff] %v451
        %v454 = vld [vmem:[#allocation2 + $0x8] sm:$0xff]
        %v455 = vld [vmem:[#allocation2 + $0x10] sm:$0xff]
        %v456 = vld [vmem:[#allocation2 + $0x18] sm:$0xff]
        %v457 = vld [vmem:[#allocation2 + $0x28] sm:$0xff]
        %v458 = vld [vmem:[#allocation2 + $0x30] sm:$0xff]
        %v459 = vld [vmem:[#allocation2 + $0x38] sm:$0xff]
        %v460 = vld [vmem:[%s351] ss:$2 sm:$0x3]
        %v462 = vlaneseq
        %v463 = vshrl.u32 %v462, 7
        %v464 = vsub.s32 0, %v463
        %v465 = vrot.slane %v460, %v464
        %v466 = vlaneseq
        %v467 = vshrl.u32 %v466, 7
        %v468 = vsub.s32 1, %v467
        %v469 = vrot.slane %v460, %v468
        %470 = vrot.lane.b32.xlu0 %v465, 1
        %v471 = vpop.permute.xlu0 %470
        %472 = vrot.lane.b32.xlu0 %v469, 1
        %v473 = vpop.permute.xlu0 %472
        %vm474 = vcmask 7168
        %v475 = vsel %vm474, %v471, %v473
        %v479 = vmul.f32 %v454, %v471
        %v480 = vmul.f32 %v455, %v475
        %v481 = vmul.f32 %v456, %v473
        %v482 = vmul.f32 %v457, %v471
        %v483 = vmul.f32 %v458, %v475
        %v484 = vmul.f32 %v459, %v473
        %v485 = vpack.c.bf16 %v482, %v479
        %v486 = vpack.c.bf16 %v483, %v480
        %v487 = vpack.c.bf16 %v484, %v481
        %491 = vrot.lane.b32.xlu0 %v485, 127
        %v492 = vpop.permute.xlu0 %491
        %493 = vrot.lane.b32.xlu0 %v486, 127
        %v494 = vpop.permute.xlu0 %493
        %495 = vrot.lane.b32.xlu0 %v487, 127
        %v496 = vpop.permute.xlu0 %495
        %vm497 = vcmask 1039360
        %v498 = vsel %vm497, %v492, %v494
        %v499 = vsel %vm497, %v494, %v496
        %502 = vst [vmem:[#allocation4 + $0x50] sm:$0xff] %v498
        %503 = vst [vmem:[#allocation4 + $0x58] sm:$0xff] %v499
        %v504 = vld [vmem:[#allocation2 + $0x8] sm:$0xff]
        %v505 = vld [vmem:[#allocation2 + $0x10] sm:$0xff]
        %v506 = vld [vmem:[#allocation2 + $0x18] sm:$0xff]
        %v507 = vld [vmem:[#allocation2 + $0x28] sm:$0xff]
        %v508 = vld [vmem:[#allocation2 + $0x30] sm:$0xff]
        %v509 = vld [vmem:[#allocation2 + $0x38] sm:$0xff]
        %v510 = vld [vmem:[%s4] ss:$2 sm:$0x3]
        %v512 = vlaneseq
        %v513 = vshrl.u32 %v512, 7
        %v514 = vsub.s32 0, %v513
        %v515 = vrot.slane %v510, %v514
        %v516 = vlaneseq
        %v517 = vshrl.u32 %v516, 7
        %v518 = vsub.s32 1, %v517
        %v519 = vrot.slane %v510, %v518
        %520 = vrot.lane.b32.xlu0 %v515, 15
        %v521 = vpop.permute.xlu0 %520
        %522 = vrot.lane.b32.xlu0 %v519, 15
        %v523 = vpop.permute.xlu0 %522
        %vm524 = vcmask 121856
        %v525 = vsel %vm524, %v521, %v523
        %v529 = vmul.f32 %v504, %v521
        %v530 = vmul.f32 %v505, %v525
        %v531 = vmul.f32 %v506, %v523
        %v532 = vmul.f32 %v507, %v521
        %v533 = vmul.f32 %v508, %v525
        %v534 = vmul.f32 %v509, %v523
        %v535 = vpack.c.bf16 %v532, %v529
        %v536 = vpack.c.bf16 %v533, %v530
        %v537 = vpack.c.bf16 %v534, %v531
        %541 = vrot.lane.b32.xlu0 %v535, 113
        %v542 = vpop.permute.xlu0 %541
        %543 = vrot.lane.b32.xlu0 %v536, 113
        %v544 = vpop.permute.xlu0 %543
        %545 = vrot.lane.b32.xlu0 %v537, 113
        %v546 = vpop.permute.xlu0 %545
        %vm547 = vcmask 924672
        %v548 = vsel %vm547, %v542, %v544
        %v549 = vsel %vm547, %v544, %v546
        %552 = vst [vmem:[#allocation4 + $0x60] sm:$0xff] %v548
        %553 = vst [vmem:[#allocation4 + $0x68] sm:$0xff] %v549
        %v554 = vld [vmem:[#allocation2 + $0x8] sm:$0xff]
        %v555 = vld [vmem:[#allocation2 + $0x10] sm:$0xff]
        %v556 = vld [vmem:[#allocation2 + $0x18] sm:$0xff]
        %v557 = vld [vmem:[#allocation2 + $0x28] sm:$0xff]
        %v558 = vld [vmem:[#allocation2 + $0x30] sm:$0xff]
        %v559 = vld [vmem:[#allocation2 + $0x38] sm:$0xff]
        %v560 = vpack.c.bf16 %v557, %v554
        %v561 = vpack.c.bf16 %v558, %v555
        %v562 = vpack.c.bf16 %v559, %v556
        %566 = vrot.lane.b32.xlu0 %v560, 112
        %v567 = vpop.permute.xlu0 %566
        %568 = vrot.lane.b32.xlu0 %v561, 112
        %v569 = vpop.permute.xlu0 %568
        %570 = vrot.lane.b32.xlu0 %v562, 112
        %v571 = vpop.permute.xlu0 %570
        %vm572 = vcmask 916480
        %v573 = vsel %vm572, %v567, %v569
        %v574 = vsel %vm572, %v569, %v571
        %577 = vst [vmem:[#allocation4 + $0x70] sm:$0xff] %v573
        %578 = vst [vmem:[#allocation4 + $0x78] sm:$0xff] %v574
        %v579 = vld [vmem:[#allocation2 + $0x8] sm:$0xff]
        %v580 = vld [vmem:[#allocation2 + $0x10] sm:$0xff]
        %v581 = vld [vmem:[#allocation2 + $0x18] sm:$0xff]
        %v582 = vld [vmem:[#allocation2 + $0x28] sm:$0xff]
        %v583 = vld [vmem:[#allocation2 + $0x30] sm:$0xff]
        %v584 = vld [vmem:[#allocation2 + $0x38] sm:$0xff]
        %v585 = vld [vmem:[%s351] ss:$2 sm:$0x3]
        %v587 = vlaneseq
        %v588 = vshrl.u32 %v587, 7
        %v589 = vsub.s32 0, %v588
        %v590 = vrot.slane %v585, %v589
        %v591 = vlaneseq
        %v592 = vshrl.u32 %v591, 7
        %v593 = vsub.s32 1, %v592
        %v594 = vrot.slane %v585, %v593
        %595 = vrot.lane.b32.xlu0 %v590, 17
        %v596 = vpop.permute.xlu0 %595
        %597 = vrot.lane.b32.xlu0 %v594, 17
        %v598 = vpop.permute.xlu0 %597
        %vm599 = vcmask 138240
        %v600 = vsel %vm599, %v596, %v598
        %v604 = vmul.f32 %v579, %v596
        %v605 = vmul.f32 %v580, %v600
        %v606 = vmul.f32 %v581, %v598
        %v607 = vmul.f32 %v582, %v596
        %v608 = vmul.f32 %v583, %v600
        %v609 = vmul.f32 %v584, %v598
        %v610 = vpack.c.bf16 %v607, %v604
        %v611 = vpack.c.bf16 %v608, %v605
        %v612 = vpack.c.bf16 %v609, %v606
        %616 = vrot.lane.b32.xlu0 %v610, 111
        %v617 = vpop.permute.xlu0 %616
        %618 = vrot.lane.b32.xlu0 %v611, 111
        %v619 = vpop.permute.xlu0 %618
        %620 = vrot.lane.b32.xlu0 %v612, 111
        %v621 = vpop.permute.xlu0 %620
        %vm622 = vcmask 908288
        %v623 = vsel %vm622, %v617, %v619
        %v624 = vsel %vm622, %v619, %v621
        %627 = vst [vmem:[#allocation4 + $0x80] sm:$0xff] %v623
        %628 = vst [vmem:[#allocation4 + $0x88] sm:$0xff] %v624
        %v629 = vld [vmem:[#allocation8] sm:$0xff]
        %v630 = vld [vmem:[#allocation8 + $0x8] sm:$0xff]
        %v631 = vld [vmem:[#allocation4] sm:$0xff]
        %v632 = vld [vmem:[#allocation4 + $0x8] sm:$0xff]
        %v633 = vld [vmem:[#allocation4 + $0x10] sm:$0xff]
        %v634 = vld [vmem:[#allocation4 + $0x18] sm:$0xff]
        %v635 = vld [vmem:[#allocation4 + $0x20] sm:$0xff]
        %v636 = vld [vmem:[#allocation4 + $0x28] sm:$0xff]
        %v637 = vld [vmem:[#allocation4 + $0x30] sm:$0xff]
        %v638 = vld [vmem:[#allocation4 + $0x38] sm:$0xff]
        %v639 = vld [vmem:[#allocation4 + $0x40] sm:$0xff]
        %v640 = vld [vmem:[#allocation4 + $0x48] sm:$0xff]
        %v641 = vld [vmem:[#allocation4 + $0x50] sm:$0xff]
        %v642 = vld [vmem:[#allocation4 + $0x58] sm:$0xff]
        %v643 = vld [vmem:[#allocation4 + $0x60] sm:$0xff]
        %v644 = vld [vmem:[#allocation4 + $0x68] sm:$0xff]
        %v645 = vld [vmem:[#allocation4 + $0x70] sm:$0xff]
        %v646 = vld [vmem:[#allocation4 + $0x78] sm:$0xff]
        %v647 = vld [vmem:[#allocation4 + $0x80] sm:$0xff]
        %v648 = vld [vmem:[#allocation4 + $0x88] sm:$0xff]
        %v649 = vld [vmem:[%s3] sm:$0xff]
        %v650 = vld [vmem:[%s3 + $0x8] sm:$0xff]
        %652 = vset.pattern.permute.xlu0 0
        %653 = vperm.xlu0 %652, %v649
        %v654 = vpop.permute.xlu0 %653
        %657 = vset.pattern.permute.xlu0 0
        %658 = vperm.xlu0 %657, %v650
        %v659 = vpop.permute.xlu0 %658
        %v663 = vunpack.c.l.b16 %v629
        %v664 = vunpack.c.h.b16 %v629
        %v665 = vunpack.c.l.b16 %v630
        %v666 = vunpack.c.h.b16 %v630
        %v667 = vpack.c.b16 %v665, %v663
        %v668 = vpack.c.b16 %v666, %v664
        %vm670 = vcmask 130048
        %v672 = vsel %vm670, %v668, 0
        %674 = vmatprep.subr.bf16.mxu0 %v632
        %675 = vmatpush1.bf16.msra.mxu0 %v631
        %676 = vmatprep.subr.bf16.mxu0 %v634
        %677 = vmatpush1.bf16.msra.mxu0 %v633
        %678 = vmatprep.subr.bf16.mxu0 %v636
        %679 = vmatpush1.bf16.msra.mxu0 %v635
        %680 = vmatprep.subr.bf16.mxu0 %v638
        %681 = vmatpush1.bf16.msra.mxu0 %v637
        %682 = vmatprep.subr.bf16.mxu0 %v640
        %683 = vmatpush1.bf16.msra.mxu0 %v639
        %684 = vmatprep.subr.bf16.mxu0 %v642
        %685 = vmatpush1.bf16.msra.mxu0 %v641
        %686 = vmatprep.subr.bf16.mxu0 %v644
        %687 = vmatpush1.bf16.msra.mxu0 %v643
        %688 = vmatprep.subr.bf16.mxu0 %v646
        %689 = vmatpush1.bf16.msra.mxu0 %v645
        %690 = vmatprep.subr.bf16.mxu0 %v648
        %691 = vmatpush1.bf16.msra.mxu0 %v647
        %692 = vmatprep.subr.bf16.mxu0 0
        %693 = vmatpush1.bf16.msra.mxu0 0
        %694 = vmatprep.subr.bf16.mxu0 0
        %695 = vmatpush1.bf16.msra.mxu0 0
        %696 = vmatprep.subr.bf16.mxu0 0
        %697 = vmatpush1.bf16.msra.mxu0 0
        %698 = vmatprep.subr.bf16.mxu0 0
        %699 = vmatpush1.bf16.msra.mxu0 0
        %700 = vmatprep.subr.bf16.mxu0 0
        %701 = vmatpush1.bf16.msra.mxu0 0
        %702 = vmatprep.subr.bf16.mxu0 0
        %703 = vmatpush1.bf16.msra.mxu0 0
        %704 = vmatprep.subr.bf16.mxu0 0
        %705 = vmatpush1.bf16.msra.mxu0 0
        %706 = vmatprep.mubr.bf16.mxu0 %v672
        %707 = vmatmul.mubr.bf16.gmra.mrb[0].mxu0 %v667
        %v708 = vpop.f32.mrb[0].mxu0
        %v709 = vadd.f32 %v654, %v708
        %v710 = vpop.f32.mrb[0].mxu0
        %v711 = vadd.f32 %v654, %v710
        %v712 = vpop.f32.mrb[0].mxu0
        %v713 = vadd.f32 %v659, %v712
        %v714 = vpop.f32.mrb[0].mxu0
        %v715 = vadd.f32 %v659, %v714
        %716 = vdwg.mxu0
        %v717 = vmax.f32 %v709, 0.0
        %v718 = vmax.f32 %v711, 0.0
        %v719 = vmax.f32 %v713, 0.0
        %v720 = vmax.f32 %v715, 0.0
        %v721 = vpack.c.bf16 %v719, %v717
        %v722 = vpack.c.bf16 %v720, %v718
        %723 = vst [vmem:[#allocation3 + $0x8] sm:$0xff] %v721
        %724 = vst [vmem:[#allocation3 + $0x10] sm:$0xff] %v722
        %v725 = vld [vmem:[#allocation3] sm:$0xff]
        %v726 = vld [vmem:[#allocation3 + $0x8] sm:$0xff]
        %v727 = vld [vmem:[#allocation3 + $0x10] sm:$0xff]
        %v728 = vld [vmem:[%s4] ss:$2 sm:$0x3]
        %v729 = vunpack.c.l.bf16 %v725
        %v730 = vunpack.c.l.bf16 %v726
        %v731 = vunpack.c.l.bf16 %v727
        %v732 = vunpack.c.h.bf16 %v725
        %v733 = vunpack.c.h.bf16 %v726
        %v734 = vunpack.c.h.bf16 %v727
        %v736 = vlaneseq
        %v737 = vshrl.u32 %v736, 7
        %v738 = vsub.s32 0, %v737
        %v739 = vrot.slane %v728, %v738
        %v740 = vlaneseq
        %v741 = vshrl.u32 %v740, 7
        %v742 = vsub.s32 1, %v741
        %v743 = vrot.slane %v728, %v742
        %744 = vrot.lane.b32.xlu0 %v739, 111
        %v745 = vpop.permute.xlu0 %744
        %746 = vrot.lane.b32.xlu0 %v743, 111
        %v747 = vpop.permute.xlu0 %746
        %v748 = vsel %vm290, %v745, %v747
        %v752 = vmul.f32 %v729, %v745
        %v753 = vmul.f32 %v730, %v748
        %v754 = vmul.f32 %v731, %v747
        %v755 = vmul.f32 %v732, %v745
        %v756 = vmul.f32 %v733, %v748
        %v757 = vmul.f32 %v734, %v747
        %v758 = vpack.c.bf16 %v755, %v752
        %v759 = vpack.c.bf16 %v756, %v753
        %v760 = vpack.c.bf16 %v757, %v754
        %764 = vrot.lane.b32.xlu0 %v758, 17
        %v765 = vpop.permute.xlu0 %764
        %766 = vrot.lane.b32.xlu0 %v759, 17
        %v767 = vpop.permute.xlu0 %766
        %768 = vrot.lane.b32.xlu0 %v760, 17
        %v769 = vpop.permute.xlu0 %768
        %v770 = vsel %vm313, %v765, %v767
        %v771 = vsel %vm313, %v767, %v769
        %774 = vst [vmem:[#allocation4] sm:$0xff] %v770
        %775 = vst [vmem:[#allocation4 + $0x8] sm:$0xff] %v771
        %v776 = vld [vmem:[#allocation3] sm:$0xff]
        %v777 = vld [vmem:[#allocation3 + $0x8] sm:$0xff]
        %v778 = vld [vmem:[#allocation3 + $0x10] sm:$0xff]
        %782 = vrot.lane.b32.xlu0 %v776, 16
        %v783 = vpop.permute.xlu0 %782
        %784 = vrot.lane.b32.xlu0 %v777, 16
        %v785 = vpop.permute.xlu0 %784
        %786 = vrot.lane.b32.xlu0 %v778, 16
        %v787 = vpop.permute.xlu0 %786
        %v788 = vsel %vm338, %v783, %v785
        %v789 = vsel %vm338, %v785, %v787
        %792 = vst [vmem:[#allocation4 + $0x10] sm:$0xff] %v788
        %793 = vst [vmem:[#allocation4 + $0x18] sm:$0xff] %v789
        %v794 = vld [vmem:[#allocation3] sm:$0xff]
        %v795 = vld [vmem:[#allocation3 + $0x8] sm:$0xff]
        %v796 = vld [vmem:[#allocation3 + $0x10] sm:$0xff]
        %v797 = vld [vmem:[%s351] ss:$2 sm:$0x3]
        %v798 = vunpack.c.l.bf16 %v794
        %v799 = vunpack.c.l.bf16 %v795
        %v800 = vunpack.c.l.bf16 %v796
        %v801 = vunpack.c.h.bf16 %v794
        %v802 = vunpack.c.h.bf16 %v795
        %v803 = vunpack.c.h.bf16 %v796
        %v805 = vlaneseq
        %v806 = vshrl.u32 %v805, 7
        %v807 = vsub.s32 0, %v806
        %v808 = vrot.slane %v797, %v807
        %v809 = vlaneseq
        %v810 = vshrl.u32 %v809, 7
        %v811 = vsub.s32 1, %v810
        %v812 = vrot.slane %v797, %v811
        %813 = vrot.lane.b32.xlu0 %v808, 113
        %v814 = vpop.permute.xlu0 %813
        %815 = vrot.lane.b32.xlu0 %v812, 113
        %v816 = vpop.permute.xlu0 %815
        %v817 = vsel %vm366, %v814, %v816
        %v821 = vmul.f32 %v798, %v814
        %v822 = vmul.f32 %v799, %v817
        %v823 = vmul.f32 %v800, %v816
        %v824 = vmul.f32 %v801, %v814
        %v825 = vmul.f32 %v802, %v817
        %v826 = vmul.f32 %v803, %v816
        %v827 = vpack.c.bf16 %v824, %v821
        %v828 = vpack.c.bf16 %v825, %v822
        %v829 = vpack.c.bf16 %v826, %v823
        %833 = vrot.lane.b32.xlu0 %v827, 15
        %v834 = vpop.permute.xlu0 %833
        %835 = vrot.lane.b32.xlu0 %v828, 15
        %v836 = vpop.permute.xlu0 %835
        %837 = vrot.lane.b32.xlu0 %v829, 15
        %v838 = vpop.permute.xlu0 %837
        %v839 = vsel %vm389, %v834, %v836
        %v840 = vsel %vm389, %v836, %v838
        %843 = vst [vmem:[#allocation4 + $0x20] sm:$0xff] %v839
        %844 = vst [vmem:[#allocation4 + $0x28] sm:$0xff] %v840
        %v845 = vld [vmem:[#allocation3] sm:$0xff]
        %v846 = vld [vmem:[#allocation3 + $0x8] sm:$0xff]
        %v847 = vld [vmem:[#allocation3 + $0x10] sm:$0xff]
        %v848 = vld [vmem:[%s4] ss:$2 sm:$0x3]
        %v849 = vunpack.c.l.bf16 %v845
        %v850 = vunpack.c.l.bf16 %v846
        %v851 = vunpack.c.l.bf16 %v847
        %v852 = vunpack.c.h.bf16 %v845
        %v853 = vunpack.c.h.bf16 %v846
        %v854 = vunpack.c.h.bf16 %v847
        %v856 = vlaneseq
        %v857 = vshrl.u32 %v856, 7
        %v858 = vsub.s32 0, %v857
        %v859 = vrot.slane %v848, %v858
        %v860 = vlaneseq
        %v861 = vshrl.u32 %v860, 7
        %v862 = vsub.s32 1, %v861
        %v863 = vrot.slane %v848, %v862
        %864 = vrot.lane.b32.xlu0 %v859, 127
        %v865 = vpop.permute.xlu0 %864
        %866 = vrot.lane.b32.xlu0 %v863, 127
        %v867 = vpop.permute.xlu0 %866
        %v868 = vsel %vm416, %v865, %v867
        %v872 = vmul.f32 %v849, %v865
        %v873 = vmul.f32 %v850, %v868
        %v874 = vmul.f32 %v851, %v867
        %v875 = vmul.f32 %v852, %v865
        %v876 = vmul.f32 %v853, %v868
        %v877 = vmul.f32 %v854, %v867
        %v878 = vpack.c.bf16 %v875, %v872
        %v879 = vpack.c.bf16 %v876, %v873
        %v880 = vpack.c.bf16 %v877, %v874
        %884 = vrot.lane.b32.xlu0 %v878, 1
        %v885 = vpop.permute.xlu0 %884
        %886 = vrot.lane.b32.xlu0 %v879, 1
        %v887 = vpop.permute.xlu0 %886
        %888 = vrot.lane.b32.xlu0 %v880, 1
        %v889 = vpop.permute.xlu0 %888
        %v890 = vsel %vm439, %v885, %v887
        %v891 = vsel %vm439, %v887, %v889
        %894 = vst [vmem:[#allocation4 + $0x30] sm:$0xff] %v890
        %895 = vst [vmem:[#allocation4 + $0x38] sm:$0xff] %v891
        %v896 = vld [vmem:[#allocation3 + $0x8] sm:$0xff]
        %v897 = vld [vmem:[#allocation3 + $0x10] sm:$0xff]
        %898 = vst [vmem:[#allocation4 + $0x40] sm:$0xff] %v896
        %899 = vst [vmem:[#allocation4 + $0x48] sm:$0xff] %v897
        %v900 = vld [vmem:[#allocation3 + $0x8] sm:$0xff]
        %v901 = vld [vmem:[#allocation3 + $0x10] sm:$0xff]
        %v902 = vld [vmem:[#allocation3 + $0x18] sm:$0xff]
        %v903 = vld [vmem:[%s351] ss:$2 sm:$0x3]
        %v904 = vunpack.c.l.bf16 %v900
        %v905 = vunpack.c.l.bf16 %v901
        %v906 = vunpack.c.l.bf16 %v902
        %v907 = vunpack.c.h.bf16 %v900
        %v908 = vunpack.c.h.bf16 %v901
        %v909 = vunpack.c.h.bf16 %v902
        %v911 = vlaneseq
        %v912 = vshrl.u32 %v911, 7
        %v913 = vsub.s32 0, %v912
        %v914 = vrot.slane %v903, %v913
        %v915 = vlaneseq
        %v916 = vshrl.u32 %v915, 7
        %v917 = vsub.s32 1, %v916
        %v918 = vrot.slane %v903, %v917
        %919 = vrot.lane.b32.xlu0 %v914, 1
        %v920 = vpop.permute.xlu0 %919
        %921 = vrot.lane.b32.xlu0 %v918, 1
        %v922 = vpop.permute.xlu0 %921
        %v923 = vsel %vm474, %v920, %v922
        %v927 = vmul.f32 %v904, %v920
        %v928 = vmul.f32 %v905, %v923
        %v929 = vmul.f32 %v906, %v922
        %v930 = vmul.f32 %v907, %v920
        %v931 = vmul.f32 %v908, %v923
        %v932 = vmul.f32 %v909, %v922
        %v933 = vpack.c.bf16 %v930, %v927
        %v934 = vpack.c.bf16 %v931, %v928
        %v935 = vpack.c.bf16 %v932, %v929
        %939 = vrot.lane.b32.xlu0 %v933, 127
        %v940 = vpop.permute.xlu0 %939
        %941 = vrot.lane.b32.xlu0 %v934, 127
        %v942 = vpop.permute.xlu0 %941
        %943 = vrot.lane.b32.xlu0 %v935, 127
        %v944 = vpop.permute.xlu0 %943
        %v945 = vsel %vm497, %v940, %v942
        %v946 = vsel %vm497, %v942, %v944
        %949 = vst [vmem:[#allocation4 + $0x50] sm:$0xff] %v945
        %950 = vst [vmem:[#allocation4 + $0x58] sm:$0xff] %v946
        %v951 = vld [vmem:[#allocation3 + $0x8] sm:$0xff]
        %v952 = vld [vmem:[#allocation3 + $0x10] sm:$0xff]
        %v953 = vld [vmem:[#allocation3 + $0x18] sm:$0xff]
        %v954 = vld [vmem:[%s4] ss:$2 sm:$0x3]
        %v955 = vunpack.c.l.bf16 %v951
        %v956 = vunpack.c.l.bf16 %v952
        %v957 = vunpack.c.l.bf16 %v953
        %v958 = vunpack.c.h.bf16 %v951
        %v959 = vunpack.c.h.bf16 %v952
        %v960 = vunpack.c.h.bf16 %v953
        %v962 = vlaneseq
        %v963 = vshrl.u32 %v962, 7
        %v964 = vsub.s32 0, %v963
        %v965 = vrot.slane %v954, %v964
        %v966 = vlaneseq
        %v967 = vshrl.u32 %v966, 7
        %v968 = vsub.s32 1, %v967
        %v969 = vrot.slane %v954, %v968
        %970 = vrot.lane.b32.xlu0 %v965, 15
        %v971 = vpop.permute.xlu0 %970
        %972 = vrot.lane.b32.xlu0 %v969, 15
        %v973 = vpop.permute.xlu0 %972
        %v974 = vsel %vm524, %v971, %v973
        %v978 = vmul.f32 %v955, %v971
        %v979 = vmul.f32 %v956, %v974
        %v980 = vmul.f32 %v957, %v973
        %v981 = vmul.f32 %v958, %v971
        %v982 = vmul.f32 %v959, %v974
        %v983 = vmul.f32 %v960, %v973
        %v984 = vpack.c.bf16 %v981, %v978
        %v985 = vpack.c.bf16 %v982, %v979
        %v986 = vpack.c.bf16 %v983, %v980
        %990 = vrot.lane.b32.xlu0 %v984, 113
        %v991 = vpop.permute.xlu0 %990
        %992 = vrot.lane.b32.xlu0 %v985, 113
        %v993 = vpop.permute.xlu0 %992
        %994 = vrot.lane.b32.xlu0 %v986, 113
        %v995 = vpop.permute.xlu0 %994
        %v996 = vsel %vm547, %v991, %v993
        %v997 = vsel %vm547, %v993, %v995
        %1000 = vst [vmem:[#allocation4 + $0x60] sm:$0xff] %v996
        %1001 = vst [vmem:[#allocation4 + $0x68] sm:$0xff] %v997
        %v1002 = vld [vmem:[#allocation3 + $0x8] sm:$0xff]
        %v1003 = vld [vmem:[#allocation3 + $0x10] sm:$0xff]
        %v1004 = vld [vmem:[#allocation3 + $0x18] sm:$0xff]
        %1008 = vrot.lane.b32.xlu0 %v1002, 112
        %v1009 = vpop.permute.xlu0 %1008
        %1010 = vrot.lane.b32.xlu0 %v1003, 112
        %v1011 = vpop.permute.xlu0 %1010
        %1012 = vrot.lane.b32.xlu0 %v1004, 112
        %v1013 = vpop.permute.xlu0 %1012
        %v1014 = vsel %vm572, %v1009, %v1011
        %v1015 = vsel %vm572, %v1011, %v1013
        %1018 = vst [vmem:[#allocation4 + $0x70] sm:$0xff] %v1014
        %1019 = vst [vmem:[#allocation4 + $0x78] sm:$0xff] %v1015
        %v1020 = vld [vmem:[#allocation3 + $0x8] sm:$0xff]
        %v1021 = vld [vmem:[#allocation3 + $0x10] sm:$0xff]
        %v1022 = vld [vmem:[#allocation3 + $0x18] sm:$0xff]
        %v1023 = vld [vmem:[%s351] ss:$2 sm:$0x3]
        %v1024 = vunpack.c.l.bf16 %v1020
        %v1025 = vunpack.c.l.bf16 %v1021
        %v1026 = vunpack.c.l.bf16 %v1022
        %v1027 = vunpack.c.h.bf16 %v1020
        %v1028 = vunpack.c.h.bf16 %v1021
        %v1029 = vunpack.c.h.bf16 %v1022
        %v1031 = vlaneseq
        %v1032 = vshrl.u32 %v1031, 7
        %v1033 = vsub.s32 0, %v1032
        %v1034 = vrot.slane %v1023, %v1033
        %v1035 = vlaneseq
        %v1036 = vshrl.u32 %v1035, 7
        %v1037 = vsub.s32 1, %v1036
        %v1038 = vrot.slane %v1023, %v1037
        %1039 = vrot.lane.b32.xlu0 %v1034, 17
        %v1040 = vpop.permute.xlu0 %1039
        %1041 = vrot.lane.b32.xlu0 %v1038, 17
        %v1042 = vpop.permute.xlu0 %1041
        %v1043 = vsel %vm599, %v1040, %v1042
        %v1047 = vmul.f32 %v1024, %v1040
        %v1048 = vmul.f32 %v1025, %v1043
        %v1049 = vmul.f32 %v1026, %v1042
        %v1050 = vmul.f32 %v1027, %v1040
        %v1051 = vmul.f32 %v1028, %v1043
        %v1052 = vmul.f32 %v1029, %v1042
        %v1053 = vpack.c.bf16 %v1050, %v1047
        %v1054 = vpack.c.bf16 %v1051, %v1048
        %v1055 = vpack.c.bf16 %v1052, %v1049
        %1059 = vrot.lane.b32.xlu0 %v1053, 111
        %v1060 = vpop.permute.xlu0 %1059
        %1061 = vrot.lane.b32.xlu0 %v1054, 111
        %v1062 = vpop.permute.xlu0 %1061
        %1063 = vrot.lane.b32.xlu0 %v1055, 111
        %v1064 = vpop.permute.xlu0 %1063
        %v1065 = vsel %vm622, %v1060, %v1062
        %v1066 = vsel %vm622, %v1062, %v1064
        %1069 = vst [vmem:[#allocation4 + $0x80] sm:$0xff] %v1065
        %1070 = vst [vmem:[#allocation4 + $0x88] sm:$0xff] %v1066
        %s1071 = scalar_lea.vmem [#allocation8], 16
        %v1072 = vld [vmem:[%s1071] sm:$0xff]
        %v1073 = vld [vmem:[%s1071 + $0x8] sm:$0xff]
        %v1074 = vld [vmem:[#allocation4] sm:$0xff]
        %v1075 = vld [vmem:[#allocation4 + $0x8] sm:$0xff]
        %v1076 = vld [vmem:[#allocation4 + $0x10] sm:$0xff]
        %v1077 = vld [vmem:[#allocation4 + $0x18] sm:$0xff]
        %v1078 = vld [vmem:[#allocation4 + $0x20] sm:$0xff]
        %v1079 = vld [vmem:[#allocation4 + $0x28] sm:$0xff]
        %v1080 = vld [vmem:[#allocation4 + $0x30] sm:$0xff]
        %v1081 = vld [vmem:[#allocation4 + $0x38] sm:$0xff]
        %v1082 = vld [vmem:[#allocation4 + $0x40] sm:$0xff]
        %v1083 = vld [vmem:[#allocation4 + $0x48] sm:$0xff]
        %v1084 = vld [vmem:[#allocation4 + $0x50] sm:$0xff]
        %v1085 = vld [vmem:[#allocation4 + $0x58] sm:$0xff]
        %v1086 = vld [vmem:[#allocation4 + $0x60] sm:$0xff]
        %v1087 = vld [vmem:[#allocation4 + $0x68] sm:$0xff]
        %v1088 = vld [vmem:[#allocation4 + $0x70] sm:$0xff]
        %v1089 = vld [vmem:[#allocation4 + $0x78] sm:$0xff]
        %v1090 = vld [vmem:[#allocation4 + $0x80] sm:$0xff]
        %v1091 = vld [vmem:[#allocation4 + $0x88] sm:$0xff]
        %v1092 = vld [vmem:[%s3] sm:$0xff]
        %v1093 = vld [vmem:[%s3 + $0x8] sm:$0xff]
        %1095 = vset.pattern.permute.xlu0 1
        %1096 = vperm.xlu0 %1095, %v1092
        %v1097 = vpop.permute.xlu0 %1096
        %1100 = vset.pattern.permute.xlu0 1
        %1101 = vperm.xlu0 %1100, %v1093
        %v1102 = vpop.permute.xlu0 %1101
        %v1105 = vunpack.c.l.b16 %v1072
        %v1106 = vunpack.c.h.b16 %v1072
        %v1107 = vunpack.c.l.b16 %v1073
        %v1108 = vunpack.c.h.b16 %v1073
        %v1109 = vpack.c.b16 %v1107, %v1105
        %v1110 = vpack.c.b16 %v1108, %v1106
        %v1113 = vsel %vm670, %v1110, 0
        %1115 = vmatprep.subr.bf16.mxu0 %v1075
        %1116 = vmatpush1.bf16.msra.mxu0 %v1074
        %1117 = vmatprep.subr.bf16.mxu0 %v1077
        %1118 = vmatpush1.bf16.msra.mxu0 %v1076
        %1119 = vmatprep.subr.bf16.mxu0 %v1079
        %1120 = vmatpush1.bf16.msra.mxu0 %v1078
        %1121 = vmatprep.subr.bf16.mxu0 %v1081
        %1122 = vmatpush1.bf16.msra.mxu0 %v1080
        %1123 = vmatprep.subr.bf16.mxu0 %v1083
        %1124 = vmatpush1.bf16.msra.mxu0 %v1082
        %1125 = vmatprep.subr.bf16.mxu0 %v1085
        %1126 = vmatpush1.bf16.msra.mxu0 %v1084
        %1127 = vmatprep.subr.bf16.mxu0 %v1087
        %1128 = vmatpush1.bf16.msra.mxu0 %v1086
        %1129 = vmatprep.subr.bf16.mxu0 %v1089
        %1130 = vmatpush1.bf16.msra.mxu0 %v1088
        %1131 = vmatprep.subr.bf16.mxu0 %v1091
        %1132 = vmatpush1.bf16.msra.mxu0 %v1090
        %1133 = vmatprep.subr.bf16.mxu0 0
        %1134 = vmatpush1.bf16.msra.mxu0 0
        %1135 = vmatprep.subr.bf16.mxu0 0
        %1136 = vmatpush1.bf16.msra.mxu0 0
        %1137 = vmatprep.subr.bf16.mxu0 0
        %1138 = vmatpush1.bf16.msra.mxu0 0
        %1139 = vmatprep.subr.bf16.mxu0 0
        %1140 = vmatpush1.bf16.msra.mxu0 0
        %1141 = vmatprep.subr.bf16.mxu0 0
        %1142 = vmatpush1.bf16.msra.mxu0 0
        %1143 = vmatprep.subr.bf16.mxu0 0
        %1144 = vmatpush1.bf16.msra.mxu0 0
        %1145 = vmatprep.subr.bf16.mxu0 0
        %1146 = vmatpush1.bf16.msra.mxu0 0
        %1147 = vmatprep.mubr.bf16.mxu0 %v1113
        %1148 = vmatmul.mubr.bf16.gmra.mrb[0].mxu0 %v1109
        %v1149 = vpop.f32.mrb[0].mxu0
        %v1150 = vadd.f32 %v1097, %v1149
        %v1151 = vpop.f32.mrb[0].mxu0
        %v1152 = vadd.f32 %v1097, %v1151
        %v1153 = vpop.f32.mrb[0].mxu0
        %v1154 = vpop.f32.mrb[0].mxu0
        %1155 = vdwg.mxu0
        %v1156 = vld [vmem:[#allocation2 + $0x8] sm:$0xff]
        %v1157 = vld [vmem:[#allocation2 + $0x10] sm:$0xff]
        %v1158 = vadd.f32 %v1150, %v1156
        %v1159 = vadd.f32 %v1152, %v1157
        %v1160 = vmax.f32 %v1158, 0.0
        %v1161 = vmax.f32 %v1159, 0.0
        %v1164 = vcombine.low %v1160, %v1161
        %1166 = vst [vmem:[%s245] sm:$0xff] %v1164
        %s1167 = sand.u32 %s139, 1
        %s1168 = scalar_lea.sflag [#allocation7], %s1167
        %s1169 = sand.u32 %s139, 1
        %s1170 = smul.addr %s1169, 8
        %s1171 = scalar_lea.vmem [#allocation10], %s1170
        // Predicated region
        $region49: #{tpu_custom_call.1} parent=39 // pred_check
          %p1172 = pneg %p149
        $region50: #{tpu_custom_call.1} parent=39 // pred_check_branch
          %1174 = sbr.rel (%p1172) target = $region52
        $region51: #{tpu_custom_call.1} parent=39 // pred_region
          %s1176 = ssub.s32 128, 128
          %1177 = vsyncadd %s1168, %s1176
          %s1178 = smul.addr %s21, 2
          %s1179 = smul.addr %s1178, 64
          %s1180 = scalar_lea.hbm %s5, %s1179
          %s1182 = sshll.u32 %s1171, 4
          %s1183 = int_to_ptr.vmem [resolvable:$true] %s1182
          %1185 = dma.vmem_to_hbm [thread:$0]  %s1183, 128, %s1180, %s1168
        $region52: #{tpu_custom_call.1} parent=39 // pred_fallthru
          _
      $region40: #{tpu_custom_call.1} parent=5 // pred_fallthru
        _
      %p1186 = scmp.le.s32.totalorder 2, %s16
      // Predicated region
      $region53: #{tpu_custom_call.1} parent=5 // pred_check
        %p1187 = pneg %p1186
      $region54: #{tpu_custom_call.1} parent=5 // pred_check_branch
        %1189 = sbr.rel (%p1187) target = $region56
      $region55: #{tpu_custom_call.1} parent=5 // pred_region
        %s1190 = ssub.s32 %s16, 2
        // Predicated region
        $region57: #{tpu_custom_call.1} parent=55 // pred_check
          %p1191 = pneg %p155
        $region58: #{tpu_custom_call.1} parent=55 // pred_check_branch
          %1193 = sbr.rel (%p1191) target = $region60
        $region59: #{tpu_custom_call.1} parent=55 // pred_region
          %s1194 = sand.u32 %s140, 1
          %s1195 = scalar_lea.sflag [#allocation7], %s1194
          %s1196 = sand.u32 %s140, 1
          %s1197 = smul.addr %s1196, 8
          %s1198 = scalar_lea.vmem [#allocation10], %s1197
          %1199 = dma.done %s1195, 128
        $region60: #{tpu_custom_call.1} parent=55 // pred_fallthru
          _
      $region56: #{tpu_custom_call.1} parent=5 // pred_fallthru
        _
    $region6: #{tpu_custom_call.1} parent=1 // loop_footer
      %s20 = sadd.s32 1, %s16
    $region7: #{tpu_custom_call.1} parent=1 // loop_footer_branch
      %15 = sbr.rel target = $region3
    $region8: #{tpu_custom_call.1} parent=1 // loop_exit
      _
    %1200 = vsyncpa [#allocation6], 1
    %s1201 = scalar_lea.sflag [#allocation6], 1
    %1202 = vsyncpa %s1201, 1
    %1203 = vsyncpa [#allocation9], 1
    %1204 = vsyncpa [#allocation7], 1
    %s1205 = scalar_lea.sflag [#allocation7], 1
    %1206 = vsyncpa %s1205, 1

</llo_original>
